<compile_context>
chip_gen: v6e
topology: v6e:2x2x1
jax: 0.10.0
libtpu: 0.0.40
codegen_flags: <defaults>
</compile_context>

<pallas_src>
import math

import jax
import jax.numpy as jnp
from jax.experimental import pallas as pl
from jax.experimental.pallas import tpu as pltpu


def _round_up(v, m):
    return ((v + m - 1) // m) * m


def _make_afgnn_kernel(L, tk, has_bias, x_resident):
    """Kernel over grid (row_tile i, contraction_tile k)."""

    def kernel(alpha_ref, adj_ref, x_ref, w_ref, *rest):
        if has_bias:
            b_ref, out_ref, rep_ref, acc_ref = rest
        else:
            b_ref = None
            out_ref, rep_ref, acc_ref = rest

        i = pl.program_id(0)
        k = pl.program_id(1)
        nk = pl.num_programs(1)

        @pl.when(k == 0)
        def _init():
            acc_ref[...] = jnp.zeros_like(acc_ref)

        # Fold the L adjacency operators into a single mixed tile on the VPU
        # (f32 weighted sum of bf16 tiles), then ONE bf16 MXU matmul per step.
        mix = alpha_ref[1] * adj_ref[0].astype(jnp.float32)
        for l in range(1, L):
            mix = mix + alpha_ref[1 + l] * adj_ref[l].astype(jnp.float32)

        if x_resident:
            xk = x_ref[pl.ds(pl.multiple_of(k * tk, 128), tk), :]
        else:
            xk = x_ref[...]

        acc_ref[...] += jnp.dot(
            mix.astype(jnp.bfloat16),
            xk.astype(jnp.bfloat16),
            preferred_element_type=jnp.float32,
        )

        # Self term alpha[0] * x[row tile i]: with tm == tk the x k-tile at
        # k == i IS the row tile, so no separate x stream is needed (f32 exact).
        @pl.when(k == i)
        def _self_term():
            acc_ref[...] += alpha_ref[0] * xk

        @pl.when(k == nk - 1)
        def _finalize():
            rep = acc_ref[...]
            rep_ref[...] = rep.astype(rep_ref.dtype)
            out = jnp.dot(rep, w_ref[...], preferred_element_type=jnp.float32)
            if has_bias:
                out = out + b_ref[...]
            out_ref[...] = out.astype(out_ref.dtype)

    return kernel


def afgnn_forward(x, adj, weight, linear_weight, bias=None):
    """Pallas implementation of AFGNNlayer.forward.

    Args:
      x:             [N, D]      node features
      adj:           [L, N, N]   stack of L = 3*degree normalized adjacencies
                                 (dense; torch.spmm == dense matmul here)
      weight:        [D, F_out]
      linear_weight: [L + 1]     mixing logits (softmax applied inside)
      bias:          [F_out] or None
    Returns:
      (output [N, F_out], representation_aft_fp [N, D])
    """
    N, D = x.shape
    L = adj.shape[0]
    F_out = weight.shape[1]
    assert adj.shape == (L, N, N)
    assert linear_weight.shape == (L + 1,)
    has_bias = bias is not None

    alpha = jax.nn.softmax(linear_weight.astype(jnp.float32))

    if L == 0:
        # Degenerate degree-0 case: no propagation, plain linear layer.
        rep = alpha[0] * x.astype(jnp.float32)
        out = rep @ weight.astype(jnp.float32)
        if has_bias:
            out = out + bias.astype(jnp.float32)
        return out, rep

    # ---- tile selection ---------------------------------------------------
    if N <= 512:
        tile = _round_up(N, 128)                 # small-problem fast path: 1 step
    elif N <= 2048:
        tile = _round_up((N + 1) // 2, 128)      # >= 2 row tiles (v7x megacore)
    else:
        tile = 512
    # Keep the double-buffered (L, tile, tile) bf16 adjacency block modest.
    while tile > 128 and 2 * L * tile * tile * 2 > (16 << 20):
        tile -= 128
    tm = tk = tile

    Np = _round_up(N, tile)
    Dp = _round_up(D, 128)
    Fp = _round_up(F_out, 128)

    # Pad + cast in a single pass each (adj -> bf16: dominant HBM stream).
    if (Np, Dp) != (N, D):
        xp = jnp.zeros((Np, Dp), jnp.float32).at[:N, :D].set(x.astype(jnp.float32))
    else:
        xp = x.astype(jnp.float32)
    if Np != N:
        adjp = jnp.zeros((L, Np, Np), jnp.bfloat16).at[:, :N, :N].set(
            adj.astype(jnp.bfloat16))
    else:
        adjp = adj.astype(jnp.bfloat16)
    if (Dp, Fp) != (D, F_out):
        wp = jnp.zeros((Dp, Fp), jnp.float32).at[:D, :F_out].set(
            weight.astype(jnp.float32))
    else:
        wp = weight.astype(jnp.float32)
    if has_bias:
        bp = jnp.zeros((1, Fp), jnp.float32).at[0, :F_out].set(
            bias.astype(jnp.float32))

    # x resident in VMEM (one DMA total) when small enough; otherwise stream
    # (tk, Dp) tiles (keeps v7x's smaller 64 MiB VMEM safe for huge graphs).
    x_bytes = Np * Dp * 4
    x_resident = x_bytes <= (16 << 20)

    grid = (Np // tm, Np // tk)

    in_specs = [
        pl.BlockSpec(memory_space=pltpu.SMEM),                    # alpha [L+1]
        pl.BlockSpec((L, tm, tk), lambda i, k: (0, i, k)),        # adj (all L)
    ]
    if x_resident:
        in_specs.append(pl.BlockSpec((Np, Dp), lambda i, k: (0, 0)))   # x resident
    else:
        in_specs.append(pl.BlockSpec((tk, Dp), lambda i, k: (k, 0)))   # x streamed
    in_specs.append(pl.BlockSpec((Dp, Fp), lambda i, k: (0, 0)))       # weight
    operands = [alpha, adjp, xp, wp]
    if has_bias:
        in_specs.append(pl.BlockSpec((1, Fp), lambda i, k: (0, 0)))    # bias
        operands.append(bp)

    # Estimated VMEM footprint (double-buffered pipelined blocks + scratch).
    est = (2 * (L * tm * tk * 2)
           + 2 * (x_bytes if x_resident else tk * Dp * 4)
           + 2 * (Dp * Fp * 4) + (Fp * 4 if has_bias else 0)
           + 2 * (tm * Fp * 4) + 2 * (tm * Dp * 4)
           + tm * Dp * 4)
    vmem_limit = int(min(64 << 20, max(32 << 20, 2 * est)))

    out_p, rep_p = pl.pallas_call(
        _make_afgnn_kernel(L, tk, has_bias, x_resident),
        out_shape=(
            jax.ShapeDtypeStruct((Np, Fp), jnp.float32),
            jax.ShapeDtypeStruct((Np, Dp), jnp.float32),
        ),
        grid_spec=pltpu.PrefetchScalarGridSpec(
            num_scalar_prefetch=0,
            grid=grid,
            in_specs=in_specs,
            out_specs=[
                pl.BlockSpec((tm, Fp), lambda i, k: (i, 0)),  # output
                pl.BlockSpec((tm, Dp), lambda i, k: (i, 0)),  # representation
            ],
            scratch_shapes=[pltpu.VMEM((tm, Dp), jnp.float32)],  # f32 accumulator
        ),
        compiler_params=pltpu.CompilerParams(
            dimension_semantics=("parallel", "arbitrary"),
            vmem_limit_bytes=vmem_limit,
        ),
    )(*operands)

    return out_p[:N, :F_out], rep_p[:N, :D]


def init_params(key, in_features, out_features, degree, bias=True):
    """Deterministic init mirroring AFGNNlayer.reset_parameters."""
    stdv = 1.0 / math.sqrt(out_features)
    kw, kb = jax.random.split(key)
    weight = jax.random.uniform(
        kw, (in_features, out_features), jnp.float32, minval=-stdv, maxval=stdv)
    linear_weight = jnp.full((3 * degree + 1,), 1.0 / (3 * degree + 1), jnp.float32)
    b = (jax.random.uniform(kb, (out_features,), jnp.float32,
                            minval=-stdv, maxval=stdv) if bias else None)
    return weight, linear_weight, b


if __name__ == "__main__":
    key = jax.random.PRNGKey(0)
    k_x, k_adj, k_p = jax.random.split(key, 3)

    # Small AFGNN layer: 200 nodes, 96 -> 64 features, degree=1 (=> 3 adjacencies).
    N, F_in, F_out, degree = 200, 96, 64, 1
    L = 3 * degree

    x = jax.random.normal(k_x, (N, F_in), jnp.float32)

    # Build L deterministic normalized adjacency operators.
    a = (jax.random.uniform(k_adj, (N, N)) < 0.05).astype(jnp.float32)
    a = jnp.maximum(a, a.T) + jnp.eye(N, dtype=jnp.float32)  # symmetric + self loops
    deg = a.sum(axis=1)
    d_inv = 1.0 / deg
    d_is = 1.0 / jnp.sqrt(deg)
    adj_rw = d_inv[:, None] * a                      # random-walk normalized
    adj_sym = d_is[:, None] * a * d_is[None, :]      # symmetric normalized
    adj_2hop = adj_sym @ adj_sym                     # 2-hop propagation
    adj = jnp.stack([adj_rw, adj_sym, adj_2hop], axis=0)   # [L, N, N]

    weight, linear_weight, bias = init_params(k_p, F_in, F_out, degree, bias=True)

    out, rep = afgnn_forward(x, adj, weight, linear_weight, bias)
    jax.block_until_ready((out, rep))

    # Reference in plain JAX (mirrors the PyTorch forward), f32 everywhere.
    alpha_ref = jax.nn.softmax(linear_weight)
    props = jnp.concatenate([x[None], jnp.einsum("lij,jd->lid", adj, x)], axis=0)
    rep_ref = jnp.tensordot(alpha_ref, props, axes=1)        # [N, F_in]
    out_ref = rep_ref @ weight + bias

    # adj / x go through bf16 on the MXU inside the kernel -> ~1e-3 rel error.
    assert jnp.allclose(rep, rep_ref, atol=2e-2, rtol=2e-2), "rep mismatch"
    assert jnp.allclose(out, out_ref, atol=2e-2, rtol=2e-2), "out mismatch"

    print("KERNEL_OK")
</pallas_src>

<mosaic_0001>
module attributes {stable_mosaic.version = 11 : i64} {
  func.func @kernel(%arg0: i32, %arg1: i32, %arg2: memref<4xf32, #tpu.memory_space<smem>>, %arg3: memref<3x256x256xbf16, #tpu.memory_space<vmem>>, %arg4: memref<256x128xf32, #tpu.memory_space<vmem>>, %arg5: memref<128x128xf32, #tpu.memory_space<vmem>>, %arg6: memref<1x128xf32, #tpu.memory_space<vmem>>, %arg7: memref<256x128xf32, #tpu.memory_space<vmem>>, %arg8: memref<256x128xf32, #tpu.memory_space<vmem>>, %arg9: memref<256x128xf32, #tpu.memory_space<vmem>>) attributes {dimension_semantics = [#tpu.dimension_semantics<parallel>, #tpu.dimension_semantics<arbitrary>], iteration_bounds = array<i64: 1, 1>, scalar_prefetch = 0 : i64, scratch_operands = 1 : i64, tpu.core_type = #tpu.core_type<tc>, window_params = [{transform_indices = @transform_0, window_bounds = array<i64: 4>}, {transform_indices = @transform_1, window_bounds = array<i64: 3, 256, 256>}, {pipeline_mode = #tpu.pipeline_mode<synchronous>, transform_indices = @transform_2, window_bounds = array<i64: 256, 128>}, {pipeline_mode = #tpu.pipeline_mode<synchronous>, transform_indices = @transform_3, window_bounds = array<i64: 128, 128>}, {pipeline_mode = #tpu.pipeline_mode<synchronous>, transform_indices = @transform_4, window_bounds = array<i64: 1, 128>}, {transform_indices = @transform_5, window_bounds = array<i64: 256, 128>}, {transform_indices = @transform_6, window_bounds = array<i64: 256, 128>}]} {
    %c0_i32 = arith.constant 0 : i32
    %0 = arith.cmpi eq, %arg1, %c0_i32 : i32
    %1 = arith.extui %0 : i1 to i32
    %c0_i32_0 = arith.constant 0 : i32
    %2 = arith.cmpi ne, %1, %c0_i32_0 : i32
    scf.if %2 {
      %cst_17 = arith.constant 0.000000e+00 : f32
      %39 = vector.broadcast %cst_17 : f32 to vector<256x128xf32>
      %c0_18 = arith.constant 0 : index
      %c0_19 = arith.constant 0 : index
      %40 = vector.load %arg9[%c0_18, %c0_19] : memref<256x128xf32, #tpu.memory_space<vmem>>, vector<256x128xf32>
      tpu.vector_store %arg9[%c0_18, %c0_19], %39 {strides = array<i32>} : memref<256x128xf32, #tpu.memory_space<vmem>>, vector<256x128xf32>,
    } else {
    }
    %c1 = arith.constant 1 : index
    %3 = memref.load %arg2[%c1] : memref<4xf32, #tpu.memory_space<smem>>
    %c0 = arith.constant 0 : index
    %c0_1 = arith.constant 0 : index
    %c0_2 = arith.constant 0 : index
    %4 = vector.load %arg3[%c0, %c0_1, %c0_2] : memref<3x256x256xbf16, #tpu.memory_space<vmem>>, vector<1x256x256xbf16>
    %5 = vector.shape_cast %4 : vector<1x256x256xbf16> to vector<256x256xbf16>
    %6 = arith.extf %5 : vector<256x256xbf16> to vector<256x256xf32>
    %7 = vector.broadcast %3 : f32 to vector<256x256xf32>
    %8 = arith.mulf %7, %6 : vector<256x256xf32>
    %c2 = arith.constant 2 : index
    %9 = memref.load %arg2[%c2] : memref<4xf32, #tpu.memory_space<smem>>
    %c1_3 = arith.constant 1 : index
    %c0_4 = arith.constant 0 : index
    %c0_5 = arith.constant 0 : index
    %10 = vector.load %arg3[%c1_3, %c0_4, %c0_5] : memref<3x256x256xbf16, #tpu.memory_space<vmem>>, vector<1x256x256xbf16>
    %11 = vector.shape_cast %10 : vector<1x256x256xbf16> to vector<256x256xbf16>
    %12 = arith.extf %11 : vector<256x256xbf16> to vector<256x256xf32>
    %13 = vector.broadcast %9 : f32 to vector<256x256xf32>
    %14 = arith.mulf %13, %12 : vector<256x256xf32>
    %15 = arith.addf %8, %14 : vector<256x256xf32>
    %c3 = arith.constant 3 : index
    %16 = memref.load %arg2[%c3] : memref<4xf32, #tpu.memory_space<smem>>
    %c2_6 = arith.constant 2 : index
    %c0_7 = arith.constant 0 : index
    %c0_8 = arith.constant 0 : index
    %17 = vector.load %arg3[%c2_6, %c0_7, %c0_8] : memref<3x256x256xbf16, #tpu.memory_space<vmem>>, vector<1x256x256xbf16>
    %18 = vector.shape_cast %17 : vector<1x256x256xbf16> to vector<256x256xbf16>
    %19 = arith.extf %18 : vector<256x256xbf16> to vector<256x256xf32>
    %20 = vector.broadcast %16 : f32 to vector<256x256xf32>
    %21 = arith.mulf %20, %19 : vector<256x256xf32>
    %22 = arith.addf %15, %21 : vector<256x256xf32>
    %c256_i32 = arith.constant 256 : i32
    %23 = arith.muli %arg1, %c256_i32 : i32
    %24 = tpu.assume_multiple %23, 128 : i32
    %25 = arith.index_cast %24 : i32 to index
    %c0_9 = arith.constant 0 : index
    %26 = vector.load %arg4[%25, %c0_9] : memref<256x128xf32, #tpu.memory_space<vmem>>, vector<256x128xf32>
    %c0_10 = arith.constant 0 : index
    %c0_11 = arith.constant 0 : index
    %27 = vector.load %arg9[%c0_10, %c0_11] : memref<256x128xf32, #tpu.memory_space<vmem>>, vector<256x128xf32>
    %28 = arith.truncf %22 : vector<256x256xf32> to vector<256x256xbf16>
    %29 = arith.truncf %26 : vector<256x128xf32> to vector<256x128xbf16>
    %cst = arith.constant dense<0.000000e+00> : vector<256x128xf32>
    %30 = tpu.matmul %28, %29, %cst {dimension_numbers = #tpu.dot_dimension_numbers<[1], [0], [0], [1], [0, 0, 1, 1], [], []>} : vector<256x256xbf16>, vector<256x128xbf16>, vector<256x128xf32> -> vector<256x128xf32>
    %31 = arith.addf %27, %30 : vector<256x128xf32>
    %c0_12 = arith.constant 0 : index
    %c0_13 = arith.constant 0 : index
    %32 = vector.load %arg9[%c0_12, %c0_13] : memref<256x128xf32, #tpu.memory_space<vmem>>, vector<256x128xf32>
    tpu.vector_store %arg9[%c0_12, %c0_13], %31 {strides = array<i32>} : memref<256x128xf32, #tpu.memory_space<vmem>>, vector<256x128xf32>,
    %33 = arith.cmpi eq, %arg1, %arg0 : i32
    %34 = arith.extui %33 : i1 to i32
    %c0_i32_14 = arith.constant 0 : i32
    %35 = arith.cmpi ne, %34, %c0_i32_14 : i32
    scf.if %35 {
      %c0_17 = arith.constant 0 : index
      %c0_18 = arith.constant 0 : index
      %39 = vector.load %arg9[%c0_17, %c0_18] : memref<256x128xf32, #tpu.memory_space<vmem>>, vector<256x128xf32>
      %c0_19 = arith.constant 0 : index
      %40 = memref.load %arg2[%c0_19] : memref<4xf32, #tpu.memory_space<smem>>
      %41 = vector.broadcast %40 : f32 to vector<256x128xf32>
      %42 = arith.mulf %41, %26 : vector<256x128xf32>
      %43 = arith.addf %39, %42 : vector<256x128xf32>
      %c0_20 = arith.constant 0 : index
      %c0_21 = arith.constant 0 : index
      %44 = vector.load %arg9[%c0_20, %c0_21] : memref<256x128xf32, #tpu.memory_space<vmem>>, vector<256x128xf32>
      tpu.vector_store %arg9[%c0_20, %c0_21], %43 {strides = array<i32>} : memref<256x128xf32, #tpu.memory_space<vmem>>, vector<256x128xf32>,
    } else {
    }
    %c0_i32_15 = arith.constant 0 : i32
    %36 = arith.cmpi eq, %arg1, %c0_i32_15 : i32
    %37 = arith.extui %36 : i1 to i32
    %c0_i32_16 = arith.constant 0 : i32
    %38 = arith.cmpi ne, %37, %c0_i32_16 : i32
    scf.if %38 {
      %c0_17 = arith.constant 0 : index
      %c0_18 = arith.constant 0 : index
      %39 = vector.load %arg9[%c0_17, %c0_18] : memref<256x128xf32, #tpu.memory_space<vmem>>, vector<256x128xf32>
      %c0_19 = arith.constant 0 : index
      %c0_20 = arith.constant 0 : index
      %40 = vector.load %arg8[%c0_19, %c0_20] : memref<256x128xf32, #tpu.memory_space<vmem>>, vector<256x128xf32>
      tpu.vector_store %arg8[%c0_19, %c0_20], %39 {strides = array<i32>} : memref<256x128xf32, #tpu.memory_space<vmem>>, vector<256x128xf32>,
      %c0_21 = arith.constant 0 : index
      %c0_22 = arith.constant 0 : index
      %41 = vector.load %arg5[%c0_21, %c0_22] : memref<128x128xf32, #tpu.memory_space<vmem>>, vector<128x128xf32>
      %cst_23 = arith.constant dense<0.000000e+00> : vector<256x128xf32>
      %42 = tpu.matmul %39, %41, %cst_23 {dimension_numbers = #tpu.dot_dimension_numbers<[1], [0], [0], [1], [0, 0, 1, 1], [], []>} : vector<256x128xf32>, vector<128x128xf32>, vector<256x128xf32> -> vector<256x128xf32>
      %c0_24 = arith.constant 0 : index
      %c0_25 = arith.constant 0 : index
      %43 = vector.load %arg6[%c0_24, %c0_25] : memref<1x128xf32, #tpu.memory_space<vmem>>, vector<1x128xf32>
      %44 = vector.broadcast %43 : vector<1x128xf32> to vector<256x128xf32>
      %45 = arith.addf %42, %44 : vector<256x128xf32>
      %c0_26 = arith.constant 0 : index
      %c0_27 = arith.constant 0 : index
      %46 = vector.load %arg7[%c0_26, %c0_27] : memref<256x128xf32, #tpu.memory_space<vmem>>, vector<256x128xf32>
      tpu.vector_store %arg7[%c0_26, %c0_27], %45 {strides = array<i32>} : memref<256x128xf32, #tpu.memory_space<vmem>>, vector<256x128xf32>,
    } else {
    }
    return
  }
  func.func @transform_0(%arg0: i32, %arg1: i32) -> i32 {
    %c0_i32 = arith.constant 0 : i32
    %c0_i32_0 = arith.constant 0 : i32
    return %c0_i32 : i32
  }
  func.func @transform_1(%arg0: i32, %arg1: i32) -> (i32, i32, i32) {
    %c0_i32 = arith.constant 0 : i32
    %c0_i32_0 = arith.constant 0 : i32
    return %c0_i32, %arg0, %arg1 : i32, i32, i32
  }
  func.func @transform_2(%arg0: i32, %arg1: i32) -> (i32, i32) {
    %c0_i32 = arith.constant 0 : i32
    %c0_i32_0 = arith.constant 0 : i32
    %c0_i32_1 = arith.constant 0 : i32
    return %c0_i32, %c0_i32_0 : i32, i32
  }
  func.func @transform_3(%arg0: i32, %arg1: i32) -> (i32, i32) {
    %c0_i32 = arith.constant 0 : i32
    %c0_i32_0 = arith.constant 0 : i32
    %c0_i32_1 = arith.constant 0 : i32
    return %c0_i32, %c0_i32_0 : i32, i32
  }
  func.func @transform_4(%arg0: i32, %arg1: i32) -> (i32, i32) {
    %c0_i32 = arith.constant 0 : i32
    %c0_i32_0 = arith.constant 0 : i32
    %c0_i32_1 = arith.constant 0 : i32
    return %c0_i32, %c0_i32_0 : i32, i32
  }
  func.func @transform_5(%arg0: i32, %arg1: i32) -> (i32, i32) {
    %c0_i32 = arith.constant 0 : i32
    %c0_i32_0 = arith.constant 0 : i32
    return %arg0, %c0_i32 : i32, i32
  }
  func.func @transform_6(%arg0: i32, %arg1: i32) -> (i32, i32) {
    %c0_i32 = arith.constant 0 : i32
    %c0_i32_0 = arith.constant 0 : i32
    return %arg0, %c0_i32 : i32, i32
  }
}

</mosaic_0001>

<llo_original>
// kernel: tpu_custom_call.1
$region0: #{tpu_custom_call.1}
  #allocation0 [shape = 'u32[]', space=smem, size = 0x4, offset = 0x4, fixed_abs, tag = 'smem constant byte address 0x4 - core index']
  #allocation1 [shape = 'u32[144,128]{1,0:T(1,128)}', space=vmem, size = 0x12000, scoped, tag = 'internal scratch']
  #allocation2 [shape = 'f32[256,128]{1,0:T(8,128)}', space=vmem, size = 0x20000, scoped, tag = 'scratch operand']
  %s0 = inlined_call_operand.hbm [shape: f32[4], index: 0, kind: input, shape index: {}]
  %s1 = inlined_call_operand.hbm [shape: bf16[3,256,256], index: 1, kind: input, shape index: {}]
  %s2 = inlined_call_operand.hbm [shape: f32[256,128], index: 2, kind: input, shape index: {}]
  %s3 = inlined_call_operand.hbm [shape: f32[128,128], index: 3, kind: input, shape index: {}]
  %s4 = inlined_call_operand.vmem [shape: f32[1,128], index: 4, kind: input, shape index: {}]
  %s5 = inlined_call_operand.hbm [shape: f32[256,128], index: 5, kind: output, shape index: {0}]
  %s6 = inlined_call_operand.hbm [shape: f32[256,128], index: 6, kind: output, shape index: {1}]
  %7 = xla_tuple %s5, %s6
  %s8 = sld [smem:[#allocation0]]
  $region66: #{tpu_custom_call.1} parent=0
    _
  %s10 = ssub.s32 1, %s8
  %s11 = scalar_select 0, %s10, %s8
  $region1: #{tpu_custom_call.1} parent=0
    #allocation3 [shape = 'u8[512]{0}', space=smem, size = 0x200, scoped, tag = 'input window, operand 0, single buffered']
    #allocation4 [shape = 's32[1]{0}', space=sflag, size = 0x4, scoped, tag = 'scoped memory for tpu_custom_call.1']
    #allocation5 [shape = 's32[1]{0}', space=sflag, size = 0x4, scoped, tag = 'scoped memory for tpu_custom_call.1']
    #allocation6 [shape = 's32[1]{0}', space=sflag, size = 0x4, scoped, tag = 'scoped memory for tpu_custom_call.1']
    #allocation7 [shape = 'u8[393216]{0}', space=vmem, size = 0x60000, scoped, tag = 'input window, operand 1, single buffered']
    #allocation8 [shape = 'u8[131072]{0}', space=vmem, size = 0x20000, scoped, tag = 'input window, operand 2, single buffered']
    #allocation9 [shape = 's32[1]{0}', space=sflag, size = 0x4, scoped, tag = 'scoped memory for tpu_custom_call.1']
    #allocation10 [shape = 'u8[65536]{0}', space=vmem, size = 0x10000, scoped, tag = 'input window, operand 3, single buffered']
    #allocation11 [shape = 'u8[131072]{0}', space=vmem, size = 0x20000, scoped, tag = 'output window, operand 0, single buffered']
    #allocation12 [shape = 'u8[131072]{0}', space=vmem, size = 0x20000, scoped, tag = 'output window, operand 1, single buffered']
    #allocation13 [shape = 's32[1]{0}', space=sflag, size = 0x4, scoped, tag = 'scoped memory for tpu_custom_call.1']
    %12 = vsyncpa [#allocation6], 0
    %13 = vsyncpa [#allocation4], 0
    %14 = vsyncpa [#allocation9], 0
    %15 = vsyncpa [#allocation5], 0
    %16 = vsyncpa [#allocation13], 0
    // Predicated region
    $region2: #{tpu_custom_call.1} parent=1 // pred_check
      _
    $region3: #{tpu_custom_call.1} parent=1 // pred_check_branch
      %18 = sbr.rel (0) target = $region5
    $region4: #{tpu_custom_call.1} parent=1 // pred_region
      %s20 = ssub.s32 16, 16
      %21 = vsyncadd [#allocation6], %s20
      %24 = dma.hbm_to_smem %s0, 16, [#allocation3], [#allocation6]
    $region5: #{tpu_custom_call.1} parent=1 // pred_fallthru
      _
    // Predicated region
    $region6: #{tpu_custom_call.1} parent=1 // pred_check
      _
    $region7: #{tpu_custom_call.1} parent=1 // pred_check_branch
      %26 = sbr.rel (0) target = $region9
    $region8: #{tpu_custom_call.1} parent=1 // pred_region
      %s28 = ssub.s32 12288, 12288
      %29 = vsyncadd [#allocation4], %s28
      %s30 = sshll.u32 [#allocation7], 4
      %s31 = int_to_ptr.vmem [resolvable:$true] %s30
      %36 = dma.hbm_to_vmem [thread:$0]  %s1, 12288, %s31, [#allocation4], 128, 128, 8
    $region9: #{tpu_custom_call.1} parent=1 // pred_fallthru
      _
    // Predicated region
    $region10: #{tpu_custom_call.1} parent=1 // pred_check
      _
    $region11: #{tpu_custom_call.1} parent=1 // pred_check_branch
      %38 = sbr.rel (0) target = $region13
    $region12: #{tpu_custom_call.1} parent=1 // pred_region
      %s40 = ssub.s32 4096, 4096
      %41 = vsyncadd [#allocation9], %s40
      %s42 = sshll.u32 [#allocation8], 4
      %s43 = int_to_ptr.vmem [resolvable:$true] %s42
      %48 = dma.hbm_to_vmem [thread:$0]  %s2, 4096, %s43, [#allocation9], 128, 128, 8
    $region13: #{tpu_custom_call.1} parent=1 // pred_fallthru
      _
    // Predicated region
    $region14: #{tpu_custom_call.1} parent=1 // pred_check
      _
    $region15: #{tpu_custom_call.1} parent=1 // pred_check_branch
      %50 = sbr.rel (0) target = $region17
    $region16: #{tpu_custom_call.1} parent=1 // pred_region
      %s52 = ssub.s32 2048, 2048
      %53 = vsyncadd [#allocation9], %s52
      %s54 = sshll.u32 [#allocation10], 4
      %s55 = int_to_ptr.vmem [resolvable:$true] %s54
      %60 = dma.hbm_to_vmem [thread:$0]  %s3, 2048, %s55, [#allocation9], 128, 128, 8
    $region17: #{tpu_custom_call.1} parent=1 // pred_fallthru
      _
    // Predicated region
    $region18: #{tpu_custom_call.1} parent=1 // pred_check
      _
    $region19: #{tpu_custom_call.1} parent=1 // pred_check_branch
      %62 = sbr.rel (0) target = $region21
    $region20: #{tpu_custom_call.1} parent=1 // pred_region
      _
    $region21: #{tpu_custom_call.1} parent=1 // pred_fallthru
      _
    // Predicated region
    $region22: #{tpu_custom_call.1} parent=1 // pred_check
      _
    $region23: #{tpu_custom_call.1} parent=1 // pred_check_branch
      %64 = sbr.rel (0) target = $region25
    $region24: #{tpu_custom_call.1} parent=1 // pred_region
      %65 = dma.done [#allocation6], 16
    $region25: #{tpu_custom_call.1} parent=1 // pred_fallthru
      _
    // Predicated region
    $region26: #{tpu_custom_call.1} parent=1 // pred_check
      _
    $region27: #{tpu_custom_call.1} parent=1 // pred_check_branch
      %67 = sbr.rel (0) target = $region29
    $region28: #{tpu_custom_call.1} parent=1 // pred_region
      %68 = dma.done [#allocation4], 12288
    $region29: #{tpu_custom_call.1} parent=1 // pred_fallthru
      _
    // Predicated region
    $region30: #{tpu_custom_call.1} parent=1 // pred_check
      _
    $region31: #{tpu_custom_call.1} parent=1 // pred_check_branch
      %70 = sbr.rel (0) target = $region33
    $region32: #{tpu_custom_call.1} parent=1 // pred_region
      %71 = dma.done [#allocation9], 4096
    $region33: #{tpu_custom_call.1} parent=1 // pred_fallthru
      _
    // Predicated region
    $region34: #{tpu_custom_call.1} parent=1 // pred_check
      _
    $region35: #{tpu_custom_call.1} parent=1 // pred_check_branch
      %73 = sbr.rel (0) target = $region37
    $region36: #{tpu_custom_call.1} parent=1 // pred_region
      %74 = dma.done [#allocation9], 2048
    $region37: #{tpu_custom_call.1} parent=1 // pred_fallthru
      _
    %75 = sfence
    %p77 = scmp.eq.s32.totalorder 0, 0
    // Predicated region
    $region38: #{tpu_custom_call.1} parent=1 // pred_check
      %p78 = pneg %p77
    $region39: #{tpu_custom_call.1} parent=1 // pred_check_branch
      %80 = sbr.rel (%p78) target = $region41
    $region40: #{tpu_custom_call.1} parent=1 // pred_region
      %81 = vst [vmem:[#allocation2] sm:$0xff] 0.0
      %82 = vst [vmem:[#allocation2 + $0x8] sm:$0xff] 0.0
      %83 = vst [vmem:[#allocation2 + $0x10] sm:$0xff] 0.0
      %84 = vst [vmem:[#allocation2 + $0x18] sm:$0xff] 0.0
      %85 = vst [vmem:[#allocation2 + $0x20] sm:$0xff] 0.0
      %86 = vst [vmem:[#allocation2 + $0x28] sm:$0xff] 0.0
      %87 = vst [vmem:[#allocation2 + $0x30] sm:$0xff] 0.0
      %88 = vst [vmem:[#allocation2 + $0x38] sm:$0xff] 0.0
      %89 = vst [vmem:[#allocation2 + $0x40] sm:$0xff] 0.0
      %90 = vst [vmem:[#allocation2 + $0x48] sm:$0xff] 0.0
      %91 = vst [vmem:[#allocation2 + $0x50] sm:$0xff] 0.0
      %92 = vst [vmem:[#allocation2 + $0x58] sm:$0xff] 0.0
      %93 = vst [vmem:[#allocation2 + $0x60] sm:$0xff] 0.0
      %94 = vst [vmem:[#allocation2 + $0x68] sm:$0xff] 0.0
      %95 = vst [vmem:[#allocation2 + $0x70] sm:$0xff] 0.0
      %96 = vst [vmem:[#allocation2 + $0x78] sm:$0xff] 0.0
      %97 = vst [vmem:[#allocation2 + $0x80] sm:$0xff] 0.0
      %98 = vst [vmem:[#allocation2 + $0x88] sm:$0xff] 0.0
      %99 = vst [vmem:[#allocation2 + $0x90] sm:$0xff] 0.0
      %100 = vst [vmem:[#allocation2 + $0x98] sm:$0xff] 0.0
      %101 = vst [vmem:[#allocation2 + $0xa0] sm:$0xff] 0.0
      %102 = vst [vmem:[#allocation2 + $0xa8] sm:$0xff] 0.0
      %103 = vst [vmem:[#allocation2 + $0xb0] sm:$0xff] 0.0
      %104 = vst [vmem:[#allocation2 + $0xb8] sm:$0xff] 0.0
      %105 = vst [vmem:[#allocation2 + $0xc0] sm:$0xff] 0.0
      %106 = vst [vmem:[#allocation2 + $0xc8] sm:$0xff] 0.0
      %107 = vst [vmem:[#allocation2 + $0xd0] sm:$0xff] 0.0
      %108 = vst [vmem:[#allocation2 + $0xd8] sm:$0xff] 0.0
      %109 = vst [vmem:[#allocation2 + $0xe0] sm:$0xff] 0.0
      %110 = vst [vmem:[#allocation2 + $0xe8] sm:$0xff] 0.0
      %111 = vst [vmem:[#allocation2 + $0xf0] sm:$0xff] 0.0
      %112 = vst [vmem:[#allocation2 + $0xf8] sm:$0xff] 0.0
    $region41: #{tpu_custom_call.1} parent=1 // pred_fallthru
      _
    %s113 = sld [smem:[#allocation3 + $0x1]]
    %v114 = vld [vmem:[#allocation7] sm:$0xff]
    %v115 = vld [vmem:[#allocation7 + $0x8] sm:$0xff]
    %v116 = vld [vmem:[#allocation7 + $0x10] sm:$0xff]
    %v117 = vld [vmem:[#allocation7 + $0x18] sm:$0xff]
    %v118 = vld [vmem:[#allocation7 + $0x20] sm:$0xff]
    %v119 = vld [vmem:[#allocation7 + $0x28] sm:$0xff]
    %v120 = vld [vmem:[#allocation7 + $0x30] sm:$0xff]
    %v121 = vld [vmem:[#allocation7 + $0x38] sm:$0xff]
    %v122 = vld [vmem:[#allocation7 + $0x40] sm:$0xff]
    %v123 = vld [vmem:[#allocation7 + $0x48] sm:$0xff]
    %v124 = vld [vmem:[#allocation7 + $0x50] sm:$0xff]
    %v125 = vld [vmem:[#allocation7 + $0x58] sm:$0xff]
    %v126 = vld [vmem:[#allocation7 + $0x60] sm:$0xff]
    %v127 = vld [vmem:[#allocation7 + $0x68] sm:$0xff]
    %v128 = vld [vmem:[#allocation7 + $0x70] sm:$0xff]
    %v129 = vld [vmem:[#allocation7 + $0x78] sm:$0xff]
    %v130 = vld [vmem:[#allocation7 + $0x80] sm:$0xff]
    %v131 = vld [vmem:[#allocation7 + $0x88] sm:$0xff]
    %v132 = vld [vmem:[#allocation7 + $0x90] sm:$0xff]
    %v133 = vld [vmem:[#allocation7 + $0x98] sm:$0xff]
    %v134 = vld [vmem:[#allocation7 + $0xa0] sm:$0xff]
    %v135 = vld [vmem:[#allocation7 + $0xa8] sm:$0xff]
    %v136 = vld [vmem:[#allocation7 + $0xb0] sm:$0xff]
    %v137 = vld [vmem:[#allocation7 + $0xb8] sm:$0xff]
    %v138 = vld [vmem:[#allocation7 + $0xc0] sm:$0xff]
    %v139 = vld [vmem:[#allocation7 + $0xc8] sm:$0xff]
    %v140 = vld [vmem:[#allocation7 + $0xd0] sm:$0xff]
    %v141 = vld [vmem:[#allocation7 + $0xd8] sm:$0xff]
    %v142 = vld [vmem:[#allocation7 + $0xe0] sm:$0xff]
    %v143 = vld [vmem:[#allocation7 + $0xe8] sm:$0xff]
    %v144 = vld [vmem:[#allocation7 + $0xf0] sm:$0xff]
    %v145 = vld [vmem:[#allocation7 + $0xf8] sm:$0xff]
    %v146 = vunpack.c.l.bf16 %v114
    %v147 = vunpack.c.h.bf16 %v114
    %v148 = vunpack.c.l.bf16 %v115
    %v149 = vunpack.c.h.bf16 %v115
    %v150 = vunpack.c.l.bf16 %v116
    %v151 = vunpack.c.h.bf16 %v116
    %v152 = vunpack.c.l.bf16 %v117
    %v153 = vunpack.c.h.bf16 %v117
    %v154 = vunpack.c.l.bf16 %v118
    %v155 = vunpack.c.h.bf16 %v118
    %v156 = vunpack.c.l.bf16 %v119
    %v157 = vunpack.c.h.bf16 %v119
    %v158 = vunpack.c.l.bf16 %v120
    %v159 = vunpack.c.h.bf16 %v120
    %v160 = vunpack.c.l.bf16 %v121
    %v161 = vunpack.c.h.bf16 %v121
    %v162 = vunpack.c.l.bf16 %v122
    %v163 = vunpack.c.h.bf16 %v122
    %v164 = vunpack.c.l.bf16 %v123
    %v165 = vunpack.c.h.bf16 %v123
    %v166 = vunpack.c.l.bf16 %v124
    %v167 = vunpack.c.h.bf16 %v124
    %v168 = vunpack.c.l.bf16 %v125
    %v169 = vunpack.c.h.bf16 %v125
    %v170 = vunpack.c.l.bf16 %v126
    %v171 = vunpack.c.h.bf16 %v126
    %v172 = vunpack.c.l.bf16 %v127
    %v173 = vunpack.c.h.bf16 %v127
    %v174 = vunpack.c.l.bf16 %v128
    %v175 = vunpack.c.h.bf16 %v128
    %v176 = vunpack.c.l.bf16 %v129
    %v177 = vunpack.c.h.bf16 %v129
    %v178 = vunpack.c.l.bf16 %v130
    %v179 = vunpack.c.h.bf16 %v130
    %v180 = vunpack.c.l.bf16 %v131
    %v181 = vunpack.c.h.bf16 %v131
    %v182 = vunpack.c.l.bf16 %v132
    %v183 = vunpack.c.h.bf16 %v132
    %v184 = vunpack.c.l.bf16 %v133
    %v185 = vunpack.c.h.bf16 %v133
    %v186 = vunpack.c.l.bf16 %v134
    %v187 = vunpack.c.h.bf16 %v134
    %v188 = vunpack.c.l.bf16 %v135
    %v189 = vunpack.c.h.bf16 %v135
    %v190 = vunpack.c.l.bf16 %v136
    %v191 = vunpack.c.h.bf16 %v136
    %v192 = vunpack.c.l.bf16 %v137
    %v193 = vunpack.c.h.bf16 %v137
    %v194 = vunpack.c.l.bf16 %v138
    %v195 = vunpack.c.h.bf16 %v138
    %v196 = vunpack.c.l.bf16 %v139
    %v197 = vunpack.c.h.bf16 %v139
    %v198 = vunpack.c.l.bf16 %v140
    %v199 = vunpack.c.h.bf16 %v140
    %v200 = vunpack.c.l.bf16 %v141
    %v201 = vunpack.c.h.bf16 %v141
    %v202 = vunpack.c.l.bf16 %v142
    %v203 = vunpack.c.h.bf16 %v142
    %v204 = vunpack.c.l.bf16 %v143
    %v205 = vunpack.c.h.bf16 %v143
    %v206 = vunpack.c.l.bf16 %v144
    %v207 = vunpack.c.h.bf16 %v144
    %v208 = vunpack.c.l.bf16 %v145
    %v209 = vunpack.c.h.bf16 %v145
    %v210 = vstv %s113
    %v211 = vmul.f32 %v210, %v146
    %v212 = vmul.f32 %v210, %v147
    %v213 = vmul.f32 %v210, %v148
    %v214 = vmul.f32 %v210, %v149
    %v215 = vmul.f32 %v210, %v150
    %v216 = vmul.f32 %v210, %v151
    %v217 = vmul.f32 %v210, %v152
    %v218 = vmul.f32 %v210, %v153
    %v219 = vmul.f32 %v210, %v154
    %v220 = vmul.f32 %v210, %v155
    %v221 = vmul.f32 %v210, %v156
    %v222 = vmul.f32 %v210, %v157
    %v223 = vmul.f32 %v210, %v158
    %v224 = vmul.f32 %v210, %v159
    %v225 = vmul.f32 %v210, %v160
    %v226 = vmul.f32 %v210, %v161
    %v227 = vmul.f32 %v210, %v162
    %v228 = vmul.f32 %v210, %v163
    %v229 = vmul.f32 %v210, %v164
    %v230 = vmul.f32 %v210, %v165
    %v231 = vmul.f32 %v210, %v166
    %v232 = vmul.f32 %v210, %v167
    %v233 = vmul.f32 %v210, %v168
    %v234 = vmul.f32 %v210, %v169
    %v235 = vmul.f32 %v210, %v170
    %v236 = vmul.f32 %v210, %v171
    %v237 = vmul.f32 %v210, %v172
    %v238 = vmul.f32 %v210, %v173
    %v239 = vmul.f32 %v210, %v174
    %v240 = vmul.f32 %v210, %v175
    %v241 = vmul.f32 %v210, %v176
    %v242 = vmul.f32 %v210, %v177
    %v243 = vmul.f32 %v210, %v178
    %v244 = vmul.f32 %v210, %v179
    %v245 = vmul.f32 %v210, %v180
    %v246 = vmul.f32 %v210, %v181
    %v247 = vmul.f32 %v210, %v182
    %v248 = vmul.f32 %v210, %v183
    %v249 = vmul.f32 %v210, %v184
    %v250 = vmul.f32 %v210, %v185
    %v251 = vmul.f32 %v210, %v186
    %v252 = vmul.f32 %v210, %v187
    %v253 = vmul.f32 %v210, %v188
    %v254 = vmul.f32 %v210, %v189
    %v255 = vmul.f32 %v210, %v190
    %v256 = vmul.f32 %v210, %v191
    %v257 = vmul.f32 %v210, %v192
    %v258 = vmul.f32 %v210, %v193
    %v259 = vmul.f32 %v210, %v194
    %v260 = vmul.f32 %v210, %v195
    %v261 = vmul.f32 %v210, %v196
    %v262 = vmul.f32 %v210, %v197
    %v263 = vmul.f32 %v210, %v198
    %v264 = vmul.f32 %v210, %v199
    %v265 = vmul.f32 %v210, %v200
    %v266 = vmul.f32 %v210, %v201
    %v267 = vmul.f32 %v210, %v202
    %v268 = vmul.f32 %v210, %v203
    %v269 = vmul.f32 %v210, %v204
    %v270 = vmul.f32 %v210, %v205
    %v271 = vmul.f32 %v210, %v206
    %v272 = vmul.f32 %v210, %v207
    %v273 = vmul.f32 %v210, %v208
    %v274 = vmul.f32 %v210, %v209
    %s275 = sld [smem:[#allocation3 + $0x2]]
    %s276 = scalar_lea.vmem [#allocation7], 256
    %v277 = vld [vmem:[%s276] sm:$0xff]
    %v278 = vld [vmem:[%s276 + $0x8] sm:$0xff]
    %v279 = vld [vmem:[%s276 + $0x10] sm:$0xff]
    %v280 = vld [vmem:[%s276 + $0x18] sm:$0xff]
    %v281 = vld [vmem:[%s276 + $0x20] sm:$0xff]
    %v282 = vld [vmem:[%s276 + $0x28] sm:$0xff]
    %v283 = vld [vmem:[%s276 + $0x30] sm:$0xff]
    %v284 = vld [vmem:[%s276 + $0x38] sm:$0xff]
    %v285 = vld [vmem:[%s276 + $0x40] sm:$0xff]
    %v286 = vld [vmem:[%s276 + $0x48] sm:$0xff]
    %v287 = vld [vmem:[%s276 + $0x50] sm:$0xff]
    %v288 = vld [vmem:[%s276 + $0x58] sm:$0xff]
    %v289 = vld [vmem:[%s276 + $0x60] sm:$0xff]
    %v290 = vld [vmem:[%s276 + $0x68] sm:$0xff]
    %v291 = vld [vmem:[%s276 + $0x70] sm:$0xff]
    %v292 = vld [vmem:[%s276 + $0x78] sm:$0xff]
    %v293 = vld [vmem:[%s276 + $0x80] sm:$0xff]
    %v294 = vld [vmem:[%s276 + $0x88] sm:$0xff]
    %v295 = vld [vmem:[%s276 + $0x90] sm:$0xff]
    %v296 = vld [vmem:[%s276 + $0x98] sm:$0xff]
    %v297 = vld [vmem:[%s276 + $0xa0] sm:$0xff]
    %v298 = vld [vmem:[%s276 + $0xa8] sm:$0xff]
    %v299 = vld [vmem:[%s276 + $0xb0] sm:$0xff]
    %v300 = vld [vmem:[%s276 + $0xb8] sm:$0xff]
    %v301 = vld [vmem:[%s276 + $0xc0] sm:$0xff]
    %v302 = vld [vmem:[%s276 + $0xc8] sm:$0xff]
    %v303 = vld [vmem:[%s276 + $0xd0] sm:$0xff]
    %v304 = vld [vmem:[%s276 + $0xd8] sm:$0xff]
    %v305 = vld [vmem:[%s276 + $0xe0] sm:$0xff]
    %v306 = vld [vmem:[%s276 + $0xe8] sm:$0xff]
    %v307 = vld [vmem:[%s276 + $0xf0] sm:$0xff]
    %v308 = vld [vmem:[%s276 + $0xf8] sm:$0xff]
    %v309 = vunpack.c.l.bf16 %v277
    %v310 = vunpack.c.h.bf16 %v277
    %v311 = vunpack.c.l.bf16 %v278
    %v312 = vunpack.c.h.bf16 %v278
    %v313 = vunpack.c.l.bf16 %v279
    %v314 = vunpack.c.h.bf16 %v279
    %v315 = vunpack.c.l.bf16 %v280
    %v316 = vunpack.c.h.bf16 %v280
    %v317 = vunpack.c.l.bf16 %v281
    %v318 = vunpack.c.h.bf16 %v281
    %v319 = vunpack.c.l.bf16 %v282
    %v320 = vunpack.c.h.bf16 %v282
    %v321 = vunpack.c.l.bf16 %v283
    %v322 = vunpack.c.h.bf16 %v283
    %v323 = vunpack.c.l.bf16 %v284
    %v324 = vunpack.c.h.bf16 %v284
    %v325 = vunpack.c.l.bf16 %v285
    %v326 = vunpack.c.h.bf16 %v285
    %v327 = vunpack.c.l.bf16 %v286
    %v328 = vunpack.c.h.bf16 %v286
    %v329 = vunpack.c.l.bf16 %v287
    %v330 = vunpack.c.h.bf16 %v287
    %v331 = vunpack.c.l.bf16 %v288
    %v332 = vunpack.c.h.bf16 %v288
    %v333 = vunpack.c.l.bf16 %v289
    %v334 = vunpack.c.h.bf16 %v289
    %v335 = vunpack.c.l.bf16 %v290
    %v336 = vunpack.c.h.bf16 %v290
    %v337 = vunpack.c.l.bf16 %v291
    %v338 = vunpack.c.h.bf16 %v291
    %v339 = vunpack.c.l.bf16 %v292
    %v340 = vunpack.c.h.bf16 %v292
    %v341 = vunpack.c.l.bf16 %v293
    %v342 = vunpack.c.h.bf16 %v293
    %v343 = vunpack.c.l.bf16 %v294
    %v344 = vunpack.c.h.bf16 %v294
    %v345 = vunpack.c.l.bf16 %v295
    %v346 = vunpack.c.h.bf16 %v295
    %v347 = vunpack.c.l.bf16 %v296
    %v348 = vunpack.c.h.bf16 %v296
    %v349 = vunpack.c.l.bf16 %v297
    %v350 = vunpack.c.h.bf16 %v297
    %v351 = vunpack.c.l.bf16 %v298
    %v352 = vunpack.c.h.bf16 %v298
    %v353 = vunpack.c.l.bf16 %v299
    %v354 = vunpack.c.h.bf16 %v299
    %v355 = vunpack.c.l.bf16 %v300
    %v356 = vunpack.c.h.bf16 %v300
    %v357 = vunpack.c.l.bf16 %v301
    %v358 = vunpack.c.h.bf16 %v301
    %v359 = vunpack.c.l.bf16 %v302
    %v360 = vunpack.c.h.bf16 %v302
    %v361 = vunpack.c.l.bf16 %v303
    %v362 = vunpack.c.h.bf16 %v303
    %v363 = vunpack.c.l.bf16 %v304
    %v364 = vunpack.c.h.bf16 %v304
    %v365 = vunpack.c.l.bf16 %v305
    %v366 = vunpack.c.h.bf16 %v305
    %v367 = vunpack.c.l.bf16 %v306
    %v368 = vunpack.c.h.bf16 %v306
    %v369 = vunpack.c.l.bf16 %v307
    %v370 = vunpack.c.h.bf16 %v307
    %v371 = vunpack.c.l.bf16 %v308
    %v372 = vunpack.c.h.bf16 %v308
    %v373 = vstv %s275
    %v374 = vmul.f32 %v373, %v309
    %v375 = vmul.f32 %v373, %v310
    %v376 = vmul.f32 %v373, %v311
    %v377 = vmul.f32 %v373, %v312
    %v378 = vmul.f32 %v373, %v313
    %v379 = vmul.f32 %v373, %v314
    %v380 = vmul.f32 %v373, %v315
    %v381 = vmul.f32 %v373, %v316
    %v382 = vmul.f32 %v373, %v317
    %v383 = vmul.f32 %v373, %v318
    %v384 = vmul.f32 %v373, %v319
    %v385 = vmul.f32 %v373, %v320
    %v386 = vmul.f32 %v373, %v321
    %v387 = vmul.f32 %v373, %v322
    %v388 = vmul.f32 %v373, %v323
    %v389 = vmul.f32 %v373, %v324
    %v390 = vmul.f32 %v373, %v325
    %v391 = vmul.f32 %v373, %v326
    %v392 = vmul.f32 %v373, %v327
    %v393 = vmul.f32 %v373, %v328
    %v394 = vmul.f32 %v373, %v329
    %v395 = vmul.f32 %v373, %v330
    %v396 = vmul.f32 %v373, %v331
    %v397 = vmul.f32 %v373, %v332
    %v398 = vmul.f32 %v373, %v333
    %v399 = vmul.f32 %v373, %v334
    %v400 = vmul.f32 %v373, %v335
    %v401 = vmul.f32 %v373, %v336
    %v402 = vmul.f32 %v373, %v337
    %v403 = vmul.f32 %v373, %v338
    %v404 = vmul.f32 %v373, %v339
    %v405 = vmul.f32 %v373, %v340
    %v406 = vmul.f32 %v373, %v341
    %v407 = vmul.f32 %v373, %v342
    %v408 = vmul.f32 %v373, %v343
    %v409 = vmul.f32 %v373, %v344
    %v410 = vmul.f32 %v373, %v345
    %v411 = vmul.f32 %v373, %v346
    %v412 = vmul.f32 %v373, %v347
    %v413 = vmul.f32 %v373, %v348
    %v414 = vmul.f32 %v373, %v349
    %v415 = vmul.f32 %v373, %v350
    %v416 = vmul.f32 %v373, %v351
    %v417 = vmul.f32 %v373, %v352
    %v418 = vmul.f32 %v373, %v353
    %v419 = vmul.f32 %v373, %v354
    %v420 = vmul.f32 %v373, %v355
    %v421 = vmul.f32 %v373, %v356
    %v422 = vmul.f32 %v373, %v357
    %v423 = vmul.f32 %v373, %v358
    %v424 = vmul.f32 %v373, %v359
    %v425 = vmul.f32 %v373, %v360
    %v426 = vmul.f32 %v373, %v361
    %v427 = vmul.f32 %v373, %v362
    %v428 = vmul.f32 %v373, %v363
    %v429 = vmul.f32 %v373, %v364
    %v430 = vmul.f32 %v373, %v365
    %v431 = vmul.f32 %v373, %v366
    %v432 = vmul.f32 %v373, %v367
    %v433 = vmul.f32 %v373, %v368
    %v434 = vmul.f32 %v373, %v369
    %v435 = vmul.f32 %v373, %v370
    %v436 = vmul.f32 %v373, %v371
    %v437 = vmul.f32 %v373, %v372
    %v438 = vadd.f32 %v211, %v374
    %v439 = vadd.f32 %v212, %v375
    %v440 = vadd.f32 %v213, %v376
    %v441 = vadd.f32 %v214, %v377
    %v442 = vadd.f32 %v215, %v378
    %v443 = vadd.f32 %v216, %v379
    %v444 = vadd.f32 %v217, %v380
    %v445 = vadd.f32 %v218, %v381
    %v446 = vadd.f32 %v219, %v382
    %v447 = vadd.f32 %v220, %v383
    %v448 = vadd.f32 %v221, %v384
    %v449 = vadd.f32 %v222, %v385
    %v450 = vadd.f32 %v223, %v386
    %v451 = vadd.f32 %v224, %v387
    %v452 = vadd.f32 %v225, %v388
    %v453 = vadd.f32 %v226, %v389
    %v454 = vadd.f32 %v227, %v390
    %v455 = vadd.f32 %v228, %v391
    %v456 = vadd.f32 %v229, %v392
    %v457 = vadd.f32 %v230, %v393
    %v458 = vadd.f32 %v231, %v394
    %v459 = vadd.f32 %v232, %v395
    %v460 = vadd.f32 %v233, %v396
    %v461 = vadd.f32 %v234, %v397
    %v462 = vadd.f32 %v235, %v398
    %v463 = vadd.f32 %v236, %v399
    %v464 = vadd.f32 %v237, %v400
    %v465 = vadd.f32 %v238, %v401
    %v466 = vadd.f32 %v239, %v402
    %v467 = vadd.f32 %v240, %v403
    %v468 = vadd.f32 %v241, %v404
    %v469 = vadd.f32 %v242, %v405
    %v470 = vadd.f32 %v243, %v406
    %v471 = vadd.f32 %v244, %v407
    %v472 = vadd.f32 %v245, %v408
    %v473 = vadd.f32 %v246, %v409
    %v474 = vadd.f32 %v247, %v410
    %v475 = vadd.f32 %v248, %v411
    %v476 = vadd.f32 %v249, %v412
    %v477 = vadd.f32 %v250, %v413
    %v478 = vadd.f32 %v251, %v414
    %v479 = vadd.f32 %v252, %v415
    %v480 = vadd.f32 %v253, %v416
    %v481 = vadd.f32 %v254, %v417
    %v482 = vadd.f32 %v255, %v418
    %v483 = vadd.f32 %v256, %v419
    %v484 = vadd.f32 %v257, %v420
    %v485 = vadd.f32 %v258, %v421
    %v486 = vadd.f32 %v259, %v422
    %v487 = vadd.f32 %v260, %v423
    %v488 = vadd.f32 %v261, %v424
    %v489 = vadd.f32 %v262, %v425
    %v490 = vadd.f32 %v263, %v426
    %v491 = vadd.f32 %v264, %v427
    %v492 = vadd.f32 %v265, %v428
    %v493 = vadd.f32 %v266, %v429
    %v494 = vadd.f32 %v267, %v430
    %v495 = vadd.f32 %v268, %v431
    %v496 = vadd.f32 %v269, %v432
    %v497 = vadd.f32 %v270, %v433
    %v498 = vadd.f32 %v271, %v434
    %v499 = vadd.f32 %v272, %v435
    %v500 = vadd.f32 %v273, %v436
    %v501 = vadd.f32 %v274, %v437
    %s502 = sld [smem:[#allocation3 + $0x3]]
    %s503 = scalar_lea.vmem [#allocation7], 512
    %v504 = vld [vmem:[%s503] sm:$0xff]
    %v505 = vld [vmem:[%s503 + $0x8] sm:$0xff]
    %v506 = vld [vmem:[%s503 + $0x10] sm:$0xff]
    %v507 = vld [vmem:[%s503 + $0x18] sm:$0xff]
    %v508 = vld [vmem:[%s503 + $0x20] sm:$0xff]
    %v509 = vld [vmem:[%s503 + $0x28] sm:$0xff]
    %v510 = vld [vmem:[%s503 + $0x30] sm:$0xff]
    %v511 = vld [vmem:[%s503 + $0x38] sm:$0xff]
    %v512 = vld [vmem:[%s503 + $0x40] sm:$0xff]
    %v513 = vld [vmem:[%s503 + $0x48] sm:$0xff]
    %v514 = vld [vmem:[%s503 + $0x50] sm:$0xff]
    %v515 = vld [vmem:[%s503 + $0x58] sm:$0xff]
    %v516 = vld [vmem:[%s503 + $0x60] sm:$0xff]
    %v517 = vld [vmem:[%s503 + $0x68] sm:$0xff]
    %v518 = vld [vmem:[%s503 + $0x70] sm:$0xff]
    %v519 = vld [vmem:[%s503 + $0x78] sm:$0xff]
    %v520 = vld [vmem:[%s503 + $0x80] sm:$0xff]
    %v521 = vld [vmem:[%s503 + $0x88] sm:$0xff]
    %v522 = vld [vmem:[%s503 + $0x90] sm:$0xff]
    %v523 = vld [vmem:[%s503 + $0x98] sm:$0xff]
    %v524 = vld [vmem:[%s503 + $0xa0] sm:$0xff]
    %v525 = vld [vmem:[%s503 + $0xa8] sm:$0xff]
    %v526 = vld [vmem:[%s503 + $0xb0] sm:$0xff]
    %v527 = vld [vmem:[%s503 + $0xb8] sm:$0xff]
    %v528 = vld [vmem:[%s503 + $0xc0] sm:$0xff]
    %v529 = vld [vmem:[%s503 + $0xc8] sm:$0xff]
    %v530 = vld [vmem:[%s503 + $0xd0] sm:$0xff]
    %v531 = vld [vmem:[%s503 + $0xd8] sm:$0xff]
    %v532 = vld [vmem:[%s503 + $0xe0] sm:$0xff]
    %v533 = vld [vmem:[%s503 + $0xe8] sm:$0xff]
    %v534 = vld [vmem:[%s503 + $0xf0] sm:$0xff]
    %v535 = vld [vmem:[%s503 + $0xf8] sm:$0xff]
    %v536 = vunpack.c.l.bf16 %v504
    %v537 = vunpack.c.h.bf16 %v504
    %v538 = vunpack.c.l.bf16 %v505
    %v539 = vunpack.c.h.bf16 %v505
    %v540 = vunpack.c.l.bf16 %v506
    %v541 = vunpack.c.h.bf16 %v506
    %v542 = vunpack.c.l.bf16 %v507
    %v543 = vunpack.c.h.bf16 %v507
    %v544 = vunpack.c.l.bf16 %v508
    %v545 = vunpack.c.h.bf16 %v508
    %v546 = vunpack.c.l.bf16 %v509
    %v547 = vunpack.c.h.bf16 %v509
    %v548 = vunpack.c.l.bf16 %v510
    %v549 = vunpack.c.h.bf16 %v510
    %v550 = vunpack.c.l.bf16 %v511
    %v551 = vunpack.c.h.bf16 %v511
    %v552 = vunpack.c.l.bf16 %v512
    %v553 = vunpack.c.h.bf16 %v512
    %v554 = vunpack.c.l.bf16 %v513
    %v555 = vunpack.c.h.bf16 %v513
    %v556 = vunpack.c.l.bf16 %v514
    %v557 = vunpack.c.h.bf16 %v514
    %v558 = vunpack.c.l.bf16 %v515
    %v559 = vunpack.c.h.bf16 %v515
    %v560 = vunpack.c.l.bf16 %v516
    %v561 = vunpack.c.h.bf16 %v516
    %v562 = vunpack.c.l.bf16 %v517
    %v563 = vunpack.c.h.bf16 %v517
    %v564 = vunpack.c.l.bf16 %v518
    %v565 = vunpack.c.h.bf16 %v518
    %v566 = vunpack.c.l.bf16 %v519
    %v567 = vunpack.c.h.bf16 %v519
    %v568 = vunpack.c.l.bf16 %v520
    %v569 = vunpack.c.h.bf16 %v520
    %v570 = vunpack.c.l.bf16 %v521
    %v571 = vunpack.c.h.bf16 %v521
    %v572 = vunpack.c.l.bf16 %v522
    %v573 = vunpack.c.h.bf16 %v522
    %v574 = vunpack.c.l.bf16 %v523
    %v575 = vunpack.c.h.bf16 %v523
    %v576 = vunpack.c.l.bf16 %v524
    %v577 = vunpack.c.h.bf16 %v524
    %v578 = vunpack.c.l.bf16 %v525
    %v579 = vunpack.c.h.bf16 %v525
    %v580 = vunpack.c.l.bf16 %v526
    %v581 = vunpack.c.h.bf16 %v526
    %v582 = vunpack.c.l.bf16 %v527
    %v583 = vunpack.c.h.bf16 %v527
    %v584 = vunpack.c.l.bf16 %v528
    %v585 = vunpack.c.h.bf16 %v528
    %v586 = vunpack.c.l.bf16 %v529
    %v587 = vunpack.c.h.bf16 %v529
    %v588 = vunpack.c.l.bf16 %v530
    %v589 = vunpack.c.h.bf16 %v530
    %v590 = vunpack.c.l.bf16 %v531
    %v591 = vunpack.c.h.bf16 %v531
    %v592 = vunpack.c.l.bf16 %v532
    %v593 = vunpack.c.h.bf16 %v532
    %v594 = vunpack.c.l.bf16 %v533
    %v595 = vunpack.c.h.bf16 %v533
    %v596 = vunpack.c.l.bf16 %v534
    %v597 = vunpack.c.h.bf16 %v534
    %v598 = vunpack.c.l.bf16 %v535
    %v599 = vunpack.c.h.bf16 %v535
    %v600 = vstv %s502
    %v601 = vmul.f32 %v600, %v536
    %v602 = vmul.f32 %v600, %v537
    %v603 = vmul.f32 %v600, %v538
    %v604 = vmul.f32 %v600, %v539
    %v605 = vmul.f32 %v600, %v540
    %v606 = vmul.f32 %v600, %v541
    %v607 = vmul.f32 %v600, %v542
    %v608 = vmul.f32 %v600, %v543
    %v609 = vmul.f32 %v600, %v544
    %v610 = vmul.f32 %v600, %v545
    %v611 = vmul.f32 %v600, %v546
    %v612 = vmul.f32 %v600, %v547
    %v613 = vmul.f32 %v600, %v548
    %v614 = vmul.f32 %v600, %v549
    %v615 = vmul.f32 %v600, %v550
    %v616 = vmul.f32 %v600, %v551
    %v617 = vmul.f32 %v600, %v552
    %v618 = vmul.f32 %v600, %v553
    %v619 = vmul.f32 %v600, %v554
    %v620 = vmul.f32 %v600, %v555
    %v621 = vmul.f32 %v600, %v556
    %v622 = vmul.f32 %v600, %v557
    %v623 = vmul.f32 %v600, %v558
    %v624 = vmul.f32 %v600, %v559
    %v625 = vmul.f32 %v600, %v560
    %v626 = vmul.f32 %v600, %v561
    %v627 = vmul.f32 %v600, %v562
    %v628 = vmul.f32 %v600, %v563
    %v629 = vmul.f32 %v600, %v564
    %v630 = vmul.f32 %v600, %v565
    %v631 = vmul.f32 %v600, %v566
    %v632 = vmul.f32 %v600, %v567
    %v633 = vmul.f32 %v600, %v568
    %v634 = vmul.f32 %v600, %v569
    %v635 = vmul.f32 %v600, %v570
    %v636 = vmul.f32 %v600, %v571
    %v637 = vmul.f32 %v600, %v572
    %v638 = vmul.f32 %v600, %v573
    %v639 = vmul.f32 %v600, %v574
    %v640 = vmul.f32 %v600, %v575
    %v641 = vmul.f32 %v600, %v576
    %v642 = vmul.f32 %v600, %v577
    %v643 = vmul.f32 %v600, %v578
    %v644 = vmul.f32 %v600, %v579
    %v645 = vmul.f32 %v600, %v580
    %v646 = vmul.f32 %v600, %v581
    %v647 = vmul.f32 %v600, %v582
    %v648 = vmul.f32 %v600, %v583
    %v649 = vmul.f32 %v600, %v584
    %v650 = vmul.f32 %v600, %v585
    %v651 = vmul.f32 %v600, %v586
    %v652 = vmul.f32 %v600, %v587
    %v653 = vmul.f32 %v600, %v588
    %v654 = vmul.f32 %v600, %v589
    %v655 = vmul.f32 %v600, %v590
    %v656 = vmul.f32 %v600, %v591
    %v657 = vmul.f32 %v600, %v592
    %v658 = vmul.f32 %v600, %v593
    %v659 = vmul.f32 %v600, %v594
    %v660 = vmul.f32 %v600, %v595
    %v661 = vmul.f32 %v600, %v596
    %v662 = vmul.f32 %v600, %v597
    %v663 = vmul.f32 %v600, %v598
    %v664 = vmul.f32 %v600, %v599
    %v665 = vadd.f32 %v438, %v601
    %v666 = vadd.f32 %v439, %v602
    %v667 = vadd.f32 %v440, %v603
    %v668 = vadd.f32 %v441, %v604
    %v669 = vadd.f32 %v442, %v605
    %v670 = vadd.f32 %v443, %v606
    %v671 = vadd.f32 %v444, %v607
    %v672 = vadd.f32 %v445, %v608
    %v673 = vadd.f32 %v446, %v609
    %v674 = vadd.f32 %v447, %v610
    %v675 = vadd.f32 %v448, %v611
    %v676 = vadd.f32 %v449, %v612
    %v677 = vadd.f32 %v450, %v613
    %v678 = vadd.f32 %v451, %v614
    %v679 = vadd.f32 %v452, %v615
    %v680 = vadd.f32 %v453, %v616
    %v681 = vadd.f32 %v454, %v617
    %v682 = vadd.f32 %v455, %v618
    %v683 = vadd.f32 %v456, %v619
    %v684 = vadd.f32 %v457, %v620
    %v685 = vadd.f32 %v458, %v621
    %v686 = vadd.f32 %v459, %v622
    %v687 = vadd.f32 %v460, %v623
    %v688 = vadd.f32 %v461, %v624
    %v689 = vadd.f32 %v462, %v625
    %v690 = vadd.f32 %v463, %v626
    %v691 = vadd.f32 %v464, %v627
    %v692 = vadd.f32 %v465, %v628
    %v693 = vadd.f32 %v466, %v629
    %v694 = vadd.f32 %v467, %v630
    %v695 = vadd.f32 %v468, %v631
    %v696 = vadd.f32 %v469, %v632
    %v697 = vadd.f32 %v470, %v633
    %v698 = vadd.f32 %v471, %v634
    %v699 = vadd.f32 %v472, %v635
    %v700 = vadd.f32 %v473, %v636
    %v701 = vadd.f32 %v474, %v637
    %v702 = vadd.f32 %v475, %v638
    %v703 = vadd.f32 %v476, %v639
    %v704 = vadd.f32 %v477, %v640
    %v705 = vadd.f32 %v478, %v641
    %v706 = vadd.f32 %v479, %v642
    %v707 = vadd.f32 %v480, %v643
    %v708 = vadd.f32 %v481, %v644
    %v709 = vadd.f32 %v482, %v645
    %v710 = vadd.f32 %v483, %v646
    %v711 = vadd.f32 %v484, %v647
    %v712 = vadd.f32 %v485, %v648
    %v713 = vadd.f32 %v486, %v649
    %v714 = vadd.f32 %v487, %v650
    %v715 = vadd.f32 %v488, %v651
    %v716 = vadd.f32 %v489, %v652
    %v717 = vadd.f32 %v490, %v653
    %v718 = vadd.f32 %v491, %v654
    %v719 = vadd.f32 %v492, %v655
    %v720 = vadd.f32 %v493, %v656
    %v721 = vadd.f32 %v494, %v657
    %v722 = vadd.f32 %v495, %v658
    %v723 = vadd.f32 %v496, %v659
    %v724 = vadd.f32 %v497, %v660
    %v725 = vadd.f32 %v498, %v661
    %v726 = vadd.f32 %v499, %v662
    %v727 = vadd.f32 %v500, %v663
    %v728 = vadd.f32 %v501, %v664
    %s729 = smul.u32 0, 256
    %s730 = scalar_lea.vmem [#allocation8], %s729
    %v731 = vld [vmem:[%s730] sm:$0xff]
    %v732 = vld [vmem:[%s730 + $0x8] sm:$0xff]
    %v733 = vld [vmem:[%s730 + $0x10] sm:$0xff]
    %v734 = vld [vmem:[%s730 + $0x18] sm:$0xff]
    %v735 = vld [vmem:[%s730 + $0x20] sm:$0xff]
    %v736 = vld [vmem:[%s730 + $0x28] sm:$0xff]
    %v737 = vld [vmem:[%s730 + $0x30] sm:$0xff]
    %v738 = vld [vmem:[%s730 + $0x38] sm:$0xff]
    %v739 = vld [vmem:[%s730 + $0x40] sm:$0xff]
    %v740 = vld [vmem:[%s730 + $0x48] sm:$0xff]
    %v741 = vld [vmem:[%s730 + $0x50] sm:$0xff]
    %v742 = vld [vmem:[%s730 + $0x58] sm:$0xff]
    %v743 = vld [vmem:[%s730 + $0x60] sm:$0xff]
    %v744 = vld [vmem:[%s730 + $0x68] sm:$0xff]
    %v745 = vld [vmem:[%s730 + $0x70] sm:$0xff]
    %v746 = vld [vmem:[%s730 + $0x78] sm:$0xff]
    %v747 = vld [vmem:[%s730 + $0x80] sm:$0xff]
    %v748 = vld [vmem:[%s730 + $0x88] sm:$0xff]
    %v749 = vld [vmem:[%s730 + $0x90] sm:$0xff]
    %v750 = vld [vmem:[%s730 + $0x98] sm:$0xff]
    %v751 = vld [vmem:[%s730 + $0xa0] sm:$0xff]
    %v752 = vld [vmem:[%s730 + $0xa8] sm:$0xff]
    %v753 = vld [vmem:[%s730 + $0xb0] sm:$0xff]
    %v754 = vld [vmem:[%s730 + $0xb8] sm:$0xff]
    %v755 = vld [vmem:[%s730 + $0xc0] sm:$0xff]
    %v756 = vld [vmem:[%s730 + $0xc8] sm:$0xff]
    %v757 = vld [vmem:[%s730 + $0xd0] sm:$0xff]
    %v758 = vld [vmem:[%s730 + $0xd8] sm:$0xff]
    %v759 = vld [vmem:[%s730 + $0xe0] sm:$0xff]
    %v760 = vld [vmem:[%s730 + $0xe8] sm:$0xff]
    %v761 = vld [vmem:[%s730 + $0xf0] sm:$0xff]
    %v762 = vld [vmem:[%s730 + $0xf8] sm:$0xff]
    %v763 = vld [vmem:[#allocation2] sm:$0xff]
    %v764 = vld [vmem:[#allocation2 + $0x8] sm:$0xff]
    %v765 = vld [vmem:[#allocation2 + $0x10] sm:$0xff]
    %v766 = vld [vmem:[#allocation2 + $0x18] sm:$0xff]
    %v767 = vld [vmem:[#allocation2 + $0x20] sm:$0xff]
    %v768 = vld [vmem:[#allocation2 + $0x28] sm:$0xff]
    %v769 = vld [vmem:[#allocation2 + $0x30] sm:$0xff]
    %v770 = vld [vmem:[#allocation2 + $0x38] sm:$0xff]
    %v771 = vld [vmem:[#allocation2 + $0x40] sm:$0xff]
    %v772 = vld [vmem:[#allocation2 + $0x48] sm:$0xff]
    %v773 = vld [vmem:[#allocation2 + $0x50] sm:$0xff]
    %v774 = vld [vmem:[#allocation2 + $0x58] sm:$0xff]
    %v775 = vld [vmem:[#allocation2 + $0x60] sm:$0xff]
    %v776 = vld [vmem:[#allocation2 + $0x68] sm:$0xff]
    %v777 = vld [vmem:[#allocation2 + $0x70] sm:$0xff]
    %v778 = vld [vmem:[#allocation2 + $0x78] sm:$0xff]
    %v779 = vld [vmem:[#allocation2 + $0x80] sm:$0xff]
    %v780 = vld [vmem:[#allocation2 + $0x88] sm:$0xff]
    %v781 = vld [vmem:[#allocation2 + $0x90] sm:$0xff]
    %v782 = vld [vmem:[#allocation2 + $0x98] sm:$0xff]
    %v783 = vld [vmem:[#allocation2 + $0xa0] sm:$0xff]
    %v784 = vld [vmem:[#allocation2 + $0xa8] sm:$0xff]
    %v785 = vld [vmem:[#allocation2 + $0xb0] sm:$0xff]
    %v786 = vld [vmem:[#allocation2 + $0xb8] sm:$0xff]
    %v787 = vld [vmem:[#allocation2 + $0xc0] sm:$0xff]
    %v788 = vld [vmem:[#allocation2 + $0xc8] sm:$0xff]
    %v789 = vld [vmem:[#allocation2 + $0xd0] sm:$0xff]
    %v790 = vld [vmem:[#allocation2 + $0xd8] sm:$0xff]
    %v791 = vld [vmem:[#allocation2 + $0xe0] sm:$0xff]
    %v792 = vld [vmem:[#allocation2 + $0xe8] sm:$0xff]
    %v793 = vld [vmem:[#allocation2 + $0xf0] sm:$0xff]
    %v794 = vld [vmem:[#allocation2 + $0xf8] sm:$0xff]
    %v795 = vpack.c.bf16 %v667, %v665
    %v796 = vpack.c.bf16 %v668, %v666
    %v797 = vpack.c.bf16 %v671, %v669
    %v798 = vpack.c.bf16 %v672, %v670
    %v799 = vpack.c.bf16 %v675, %v673
    %v800 = vpack.c.bf16 %v676, %v674
    %v801 = vpack.c.bf16 %v679, %v677
    %v802 = vpack.c.bf16 %v680, %v678
    %v803 = vpack.c.bf16 %v683, %v681
    %v804 = vpack.c.bf16 %v684, %v682
    %v805 = vpack.c.bf16 %v687, %v685
    %v806 = vpack.c.bf16 %v688, %v686
    %v807 = vpack.c.bf16 %v691, %v689
    %v808 = vpack.c.bf16 %v692, %v690
    %v809 = vpack.c.bf16 %v695, %v693
    %v810 = vpack.c.bf16 %v696, %v694
    %v811 = vpack.c.bf16 %v699, %v697
    %v812 = vpack.c.bf16 %v700, %v698
    %v813 = vpack.c.bf16 %v703, %v701
    %v814 = vpack.c.bf16 %v704, %v702
    %v815 = vpack.c.bf16 %v707, %v705
    %v816 = vpack.c.bf16 %v708, %v706
    %v817 = vpack.c.bf16 %v711, %v709
    %v818 = vpack.c.bf16 %v712, %v710
    %v819 = vpack.c.bf16 %v715, %v713
    %v820 = vpack.c.bf16 %v716, %v714
    %v821 = vpack.c.bf16 %v719, %v717
    %v822 = vpack.c.bf16 %v720, %v718
    %v823 = vpack.c.bf16 %v723, %v721
    %v824 = vpack.c.bf16 %v724, %v722
    %v825 = vpack.c.bf16 %v727, %v725
    %v826 = vpack.c.bf16 %v728, %v726
    %v827 = vpack.c.bf16 %v732, %v731
    %v828 = vpack.c.bf16 %v734, %v733
    %v829 = vpack.c.bf16 %v736, %v735
    %v830 = vpack.c.bf16 %v738, %v737
    %v831 = vpack.c.bf16 %v740, %v739
    %v832 = vpack.c.bf16 %v742, %v741
    %v833 = vpack.c.bf16 %v744, %v743
    %v834 = vpack.c.bf16 %v746, %v745
    %v835 = vpack.c.bf16 %v748, %v747
    %v836 = vpack.c.bf16 %v750, %v749
    %v837 = vpack.c.bf16 %v752, %v751
    %v838 = vpack.c.bf16 %v754, %v753
    %v839 = vpack.c.bf16 %v756, %v755
    %v840 = vpack.c.bf16 %v758, %v757
    %v841 = vpack.c.bf16 %v760, %v759
    %v842 = vpack.c.bf16 %v762, %v761
    %843 = vmatprep.subr.bf16.mxu0 0
    %844 = vmatpush1.bf16.msra.mxu0 %v834
    %845 = vmatprep.subr.bf16.mxu0 0
    %846 = vmatpush1.bf16.msra.mxu0 %v833
    %847 = vmatprep.subr.bf16.mxu0 0
    %848 = vmatpush1.bf16.msra.mxu0 %v832
    %849 = vmatprep.subr.bf16.mxu0 0
    %850 = vmatpush1.bf16.msra.mxu0 %v831
    %851 = vmatprep.subr.bf16.mxu0 0
    %852 = vmatpush1.bf16.msra.mxu0 %v830
    %853 = vmatprep.subr.bf16.mxu0 0
    %854 = vmatpush1.bf16.msra.mxu0 %v829
    %855 = vmatprep.subr.bf16.mxu0 0
    %856 = vmatpush1.bf16.msra.mxu0 %v828
    %857 = vmatprep.subr.bf16.mxu0 0
    %858 = vmatpush1.bf16.msra.mxu0 %v827
    %859 = vmatprep.subr.bf16.mxu0 0
    %860 = vmatpush2.bf16.msra.mxu0 %v842
    %861 = vmatprep.subr.bf16.mxu0 0
    %862 = vmatpush2.bf16.msra.mxu0 %v841
    %863 = vmatprep.subr.bf16.mxu0 0
    %864 = vmatpush2.bf16.msra.mxu0 %v840
    %865 = vmatprep.subr.bf16.mxu0 0
    %866 = vmatpush2.bf16.msra.mxu0 %v839
    %867 = vmatprep.subr.bf16.mxu0 0
    %868 = vmatpush2.bf16.msra.mxu0 %v838
    %869 = vmatprep.subr.bf16.mxu0 0
    %870 = vmatpush2.bf16.msra.mxu0 %v837
    %871 = vmatprep.subr.bf16.mxu0 0
    %872 = vmatpush2.bf16.msra.mxu0 %v836
    %873 = vmatprep.subr.bf16.mxu0 0
    %874 = vmatpush2.bf16.msra.mxu0 %v835
    %875 = vmatprep.mubr.bf16.mxu0 %v796
    %876 = vmatmul.mubr.bf16.gmra.mxu0 %v795
    %v877 = vpop.f32.mrf.mxu0
    %v878 = vadd.f32 0.0, %v877
    %v879 = vpop.f32.mrf.mxu0
    %v880 = vpop.f32.mrf.mxu0
    %v881 = vadd.f32 0.0, %v880
    %v882 = vpop.f32.mrf.mxu0
    %883 = vmatprep.mubr.bf16.mxu0 %v798
    %884 = vmatmul.mubr.bf16.gmra.mxu0 %v797
    %v885 = vpop.f32.mrf.mxu0
    %v886 = vadd.f32 0.0, %v885
    %v887 = vpop.f32.mrf.mxu0
    %v888 = vpop.f32.mrf.mxu0
    %v889 = vadd.f32 0.0, %v888
    %v890 = vpop.f32.mrf.mxu0
    %891 = vmatprep.mubr.bf16.mxu0 %v800
    %892 = vmatmul.mubr.bf16.gmra.mxu0 %v799
    %v893 = vpop.f32.mrf.mxu0
    %v894 = vadd.f32 0.0, %v893
    %v895 = vpop.f32.mrf.mxu0
    %v896 = vpop.f32.mrf.mxu0
    %v897 = vadd.f32 0.0, %v896
    %v898 = vpop.f32.mrf.mxu0
    %899 = vmatprep.mubr.bf16.mxu0 %v802
    %900 = vmatmul.mubr.bf16.gmra.mxu0 %v801
    %v901 = vpop.f32.mrf.mxu0
    %v902 = vadd.f32 0.0, %v901
    %v903 = vpop.f32.mrf.mxu0
    %v904 = vpop.f32.mrf.mxu0
    %v905 = vadd.f32 0.0, %v904
    %v906 = vpop.f32.mrf.mxu0
    %907 = vmatprep.mubr.bf16.mxu0 %v804
    %908 = vmatmul.mubr.bf16.gmra.mxu0 %v803
    %v909 = vpop.f32.mrf.mxu0
    %v910 = vadd.f32 0.0, %v909
    %v911 = vpop.f32.mrf.mxu0
    %v912 = vpop.f32.mrf.mxu0
    %v913 = vadd.f32 0.0, %v912
    %v914 = vpop.f32.mrf.mxu0
    %915 = vmatprep.mubr.bf16.mxu0 %v806
    %916 = vmatmul.mubr.bf16.gmra.mxu0 %v805
    %v917 = vpop.f32.mrf.mxu0
    %v918 = vadd.f32 0.0, %v917
    %v919 = vpop.f32.mrf.mxu0
    %v920 = vpop.f32.mrf.mxu0
    %v921 = vadd.f32 0.0, %v920
    %v922 = vpop.f32.mrf.mxu0
    %923 = vmatprep.mubr.bf16.mxu0 %v808
    %924 = vmatmul.mubr.bf16.gmra.mxu0 %v807
    %v925 = vpop.f32.mrf.mxu0
    %v926 = vadd.f32 0.0, %v925
    %v927 = vpop.f32.mrf.mxu0
    %v928 = vpop.f32.mrf.mxu0
    %v929 = vadd.f32 0.0, %v928
    %v930 = vpop.f32.mrf.mxu0
    %931 = vmatprep.mubr.bf16.mxu0 %v810
    %932 = vmatmul.mubr.bf16.gmra.mxu0 %v809
    %v933 = vpop.f32.mrf.mxu0
    %v934 = vadd.f32 0.0, %v933
    %v935 = vpop.f32.mrf.mxu0
    %v936 = vpop.f32.mrf.mxu0
    %v937 = vadd.f32 0.0, %v936
    %v938 = vpop.f32.mrf.mxu0
    %939 = vmatprep.mubr.bf16.mxu0 %v812
    %940 = vmatmul.mubr.bf16.gmra.mxu0 %v811
    %v941 = vpop.f32.mrf.mxu0
    %v942 = vadd.f32 0.0, %v941
    %v943 = vpop.f32.mrf.mxu0
    %v944 = vpop.f32.mrf.mxu0
    %v945 = vadd.f32 0.0, %v944
    %v946 = vpop.f32.mrf.mxu0
    %947 = vmatprep.mubr.bf16.mxu0 %v814
    %948 = vmatmul.mubr.bf16.gmra.mxu0 %v813
    %v949 = vpop.f32.mrf.mxu0
    %v950 = vadd.f32 0.0, %v949
    %v951 = vpop.f32.mrf.mxu0
    %v952 = vpop.f32.mrf.mxu0
    %v953 = vadd.f32 0.0, %v952
    %v954 = vpop.f32.mrf.mxu0
    %955 = vmatprep.mubr.bf16.mxu0 %v816
    %956 = vmatmul.mubr.bf16.gmra.mxu0 %v815
    %v957 = vpop.f32.mrf.mxu0
    %v958 = vadd.f32 0.0, %v957
    %v959 = vpop.f32.mrf.mxu0
    %v960 = vpop.f32.mrf.mxu0
    %v961 = vadd.f32 0.0, %v960
    %v962 = vpop.f32.mrf.mxu0
    %963 = vmatprep.mubr.bf16.mxu0 %v818
    %964 = vmatmul.mubr.bf16.gmra.mxu0 %v817
    %v965 = vpop.f32.mrf.mxu0
    %v966 = vadd.f32 0.0, %v965
    %v967 = vpop.f32.mrf.mxu0
    %v968 = vpop.f32.mrf.mxu0
    %v969 = vadd.f32 0.0, %v968
    %v970 = vpop.f32.mrf.mxu0
    %971 = vmatprep.mubr.bf16.mxu0 %v820
    %972 = vmatmul.mubr.bf16.gmra.mxu0 %v819
    %v973 = vpop.f32.mrf.mxu0
    %v974 = vadd.f32 0.0, %v973
    %v975 = vpop.f32.mrf.mxu0
    %v976 = vpop.f32.mrf.mxu0
    %v977 = vadd.f32 0.0, %v976
    %v978 = vpop.f32.mrf.mxu0
    %979 = vmatprep.mubr.bf16.mxu0 %v822
    %980 = vmatmul.mubr.bf16.gmra.mxu0 %v821
    %v981 = vpop.f32.mrf.mxu0
    %v982 = vadd.f32 0.0, %v981
    %v983 = vpop.f32.mrf.mxu0
    %v984 = vpop.f32.mrf.mxu0
    %v985 = vadd.f32 0.0, %v984
    %v986 = vpop.f32.mrf.mxu0
    %987 = vmatprep.mubr.bf16.mxu0 %v824
    %988 = vmatmul.mubr.bf16.gmra.mxu0 %v823
    %v989 = vpop.f32.mrf.mxu0
    %v990 = vadd.f32 0.0, %v989
    %v991 = vpop.f32.mrf.mxu0
    %v992 = vpop.f32.mrf.mxu0
    %v993 = vadd.f32 0.0, %v992
    %v994 = vpop.f32.mrf.mxu0
    %995 = vmatprep.mubr.bf16.mxu0 %v826
    %996 = vmatmul.mubr.bf16.gmra.mxu0 %v825
    %v997 = vpop.f32.mrf.mxu0
    %v998 = vadd.f32 0.0, %v997
    %v999 = vpop.f32.mrf.mxu0
    %v1000 = vpop.f32.mrf.mxu0
    %v1001 = vadd.f32 0.0, %v1000
    %v1002 = vpop.f32.mrf.mxu0
    %1003 = vdwg.mxu0
    %v1004 = vadd.f32 %v763, %v878
    %v1005 = vadd.f32 %v764, %v881
    %v1006 = vadd.f32 %v765, %v886
    %v1007 = vadd.f32 %v766, %v889
    %v1008 = vadd.f32 %v767, %v894
    %v1009 = vadd.f32 %v768, %v897
    %v1010 = vadd.f32 %v769, %v902
    %v1011 = vadd.f32 %v770, %v905
    %v1012 = vadd.f32 %v771, %v910
    %v1013 = vadd.f32 %v772, %v913
    %v1014 = vadd.f32 %v773, %v918
    %v1015 = vadd.f32 %v774, %v921
    %v1016 = vadd.f32 %v775, %v926
    %v1017 = vadd.f32 %v776, %v929
    %v1018 = vadd.f32 %v777, %v934
    %v1019 = vadd.f32 %v778, %v937
    %v1020 = vadd.f32 %v779, %v942
    %v1021 = vadd.f32 %v780, %v945
    %v1022 = vadd.f32 %v781, %v950
    %v1023 = vadd.f32 %v782, %v953
    %v1024 = vadd.f32 %v783, %v958
    %v1025 = vadd.f32 %v784, %v961
    %v1026 = vadd.f32 %v785, %v966
    %v1027 = vadd.f32 %v786, %v969
    %v1028 = vadd.f32 %v787, %v974
    %v1029 = vadd.f32 %v788, %v977
    %v1030 = vadd.f32 %v789, %v982
    %v1031 = vadd.f32 %v790, %v985
    %v1032 = vadd.f32 %v791, %v990
    %v1033 = vadd.f32 %v792, %v993
    %v1034 = vadd.f32 %v793, %v998
    %v1035 = vadd.f32 %v794, %v1001
    %1036 = vst [vmem:[#allocation2] sm:$0xff] %v1004
    %1037 = vst [vmem:[#allocation2 + $0x8] sm:$0xff] %v1005
    %1038 = vst [vmem:[#allocation2 + $0x10] sm:$0xff] %v1006
    %1039 = vst [vmem:[#allocation2 + $0x18] sm:$0xff] %v1007
    %1040 = vst [vmem:[#allocation2 + $0x20] sm:$0xff] %v1008
    %1041 = vst [vmem:[#allocation2 + $0x28] sm:$0xff] %v1009
    %1042 = vst [vmem:[#allocation2 + $0x30] sm:$0xff] %v1010
    %1043 = vst [vmem:[#allocation2 + $0x38] sm:$0xff] %v1011
    %1044 = vst [vmem:[#allocation2 + $0x40] sm:$0xff] %v1012
    %1045 = vst [vmem:[#allocation2 + $0x48] sm:$0xff] %v1013
    %1046 = vst [vmem:[#allocation2 + $0x50] sm:$0xff] %v1014
    %1047 = vst [vmem:[#allocation2 + $0x58] sm:$0xff] %v1015
    %1048 = vst [vmem:[#allocation2 + $0x60] sm:$0xff] %v1016
    %1049 = vst [vmem:[#allocation2 + $0x68] sm:$0xff] %v1017
    %1050 = vst [vmem:[#allocation2 + $0x70] sm:$0xff] %v1018
    %1051 = vst [vmem:[#allocation2 + $0x78] sm:$0xff] %v1019
    %1052 = vst [vmem:[#allocation2 + $0x80] sm:$0xff] %v1020
    %1053 = vst [vmem:[#allocation2 + $0x88] sm:$0xff] %v1021
    %1054 = vst [vmem:[#allocation2 + $0x90] sm:$0xff] %v1022
    %1055 = vst [vmem:[#allocation2 + $0x98] sm:$0xff] %v1023
    %1056 = vst [vmem:[#allocation2 + $0xa0] sm:$0xff] %v1024
    %1057 = vst [vmem:[#allocation2 + $0xa8] sm:$0xff] %v1025
    %1058 = vst [vmem:[#allocation2 + $0xb0] sm:$0xff] %v1026
    %1059 = vst [vmem:[#allocation2 + $0xb8] sm:$0xff] %v1027
    %1060 = vst [vmem:[#allocation2 + $0xc0] sm:$0xff] %v1028
    %1061 = vst [vmem:[#allocation2 + $0xc8] sm:$0xff] %v1029
    %1062 = vst [vmem:[#allocation2 + $0xd0] sm:$0xff] %v1030
    %1063 = vst [vmem:[#allocation2 + $0xd8] sm:$0xff] %v1031
    %1064 = vst [vmem:[#allocation2 + $0xe0] sm:$0xff] %v1032
    %1065 = vst [vmem:[#allocation2 + $0xe8] sm:$0xff] %v1033
    %1066 = vst [vmem:[#allocation2 + $0xf0] sm:$0xff] %v1034
    %1067 = vst [vmem:[#allocation2 + $0xf8] sm:$0xff] %v1035
    %p1068 = scmp.eq.s32.totalorder 0, 0
    // Predicated region
    $region42: #{tpu_custom_call.1} parent=1 // pred_check
      %p1069 = pneg %p1068
    $region43: #{tpu_custom_call.1} parent=1 // pred_check_branch
      %1071 = sbr.rel (%p1069) target = $region45
    $region44: #{tpu_custom_call.1} parent=1 // pred_region
      %v1072 = vld [vmem:[#allocation2] sm:$0xff]
      %v1073 = vld [vmem:[#allocation2 + $0x8] sm:$0xff]
      %v1074 = vld [vmem:[#allocation2 + $0x10] sm:$0xff]
      %v1075 = vld [vmem:[#allocation2 + $0x18] sm:$0xff]
      %v1076 = vld [vmem:[#allocation2 + $0x20] sm:$0xff]
      %v1077 = vld [vmem:[#allocation2 + $0x28] sm:$0xff]
      %v1078 = vld [vmem:[#allocation2 + $0x30] sm:$0xff]
      %v1079 = vld [vmem:[#allocation2 + $0x38] sm:$0xff]
      %v1080 = vld [vmem:[#allocation2 + $0x40] sm:$0xff]
      %v1081 = vld [vmem:[#allocation2 + $0x48] sm:$0xff]
      %v1082 = vld [vmem:[#allocation2 + $0x50] sm:$0xff]
      %v1083 = vld [vmem:[#allocation2 + $0x58] sm:$0xff]
      %v1084 = vld [vmem:[#allocation2 + $0x60] sm:$0xff]
      %v1085 = vld [vmem:[#allocation2 + $0x68] sm:$0xff]
      %v1086 = vld [vmem:[#allocation2 + $0x70] sm:$0xff]
      %v1087 = vld [vmem:[#allocation2 + $0x78] sm:$0xff]
      %v1088 = vld [vmem:[#allocation2 + $0x80] sm:$0xff]
      %v1089 = vld [vmem:[#allocation2 + $0x88] sm:$0xff]
      %v1090 = vld [vmem:[#allocation2 + $0x90] sm:$0xff]
      %v1091 = vld [vmem:[#allocation2 + $0x98] sm:$0xff]
      %v1092 = vld [vmem:[#allocation2 + $0xa0] sm:$0xff]
      %v1093 = vld [vmem:[#allocation2 + $0xa8] sm:$0xff]
      %v1094 = vld [vmem:[#allocation2 + $0xb0] sm:$0xff]
      %v1095 = vld [vmem:[#allocation2 + $0xb8] sm:$0xff]
      %v1096 = vld [vmem:[#allocation2 + $0xc0] sm:$0xff]
      %v1097 = vld [vmem:[#allocation2 + $0xc8] sm:$0xff]
      %v1098 = vld [vmem:[#allocation2 + $0xd0] sm:$0xff]
      %v1099 = vld [vmem:[#allocation2 + $0xd8] sm:$0xff]
      %v1100 = vld [vmem:[#allocation2 + $0xe0] sm:$0xff]
      %v1101 = vld [vmem:[#allocation2 + $0xe8] sm:$0xff]
      %v1102 = vld [vmem:[#allocation2 + $0xf0] sm:$0xff]
      %v1103 = vld [vmem:[#allocation2 + $0xf8] sm:$0xff]
      %s1104 = sld [smem:[#allocation3]]
      %v1105 = vstv %s1104
      %v1106 = vmul.f32 %v1105, %v731
      %v1107 = vmul.f32 %v1105, %v732
      %v1108 = vmul.f32 %v1105, %v733
      %v1109 = vmul.f32 %v1105, %v734
      %v1110 = vmul.f32 %v1105, %v735
      %v1111 = vmul.f32 %v1105, %v736
      %v1112 = vmul.f32 %v1105, %v737
      %v1113 = vmul.f32 %v1105, %v738
      %v1114 = vmul.f32 %v1105, %v739
      %v1115 = vmul.f32 %v1105, %v740
      %v1116 = vmul.f32 %v1105, %v741
      %v1117 = vmul.f32 %v1105, %v742
      %v1118 = vmul.f32 %v1105, %v743
      %v1119 = vmul.f32 %v1105, %v744
      %v1120 = vmul.f32 %v1105, %v745
      %v1121 = vmul.f32 %v1105, %v746
      %v1122 = vmul.f32 %v1105, %v747
      %v1123 = vmul.f32 %v1105, %v748
      %v1124 = vmul.f32 %v1105, %v749
      %v1125 = vmul.f32 %v1105, %v750
      %v1126 = vmul.f32 %v1105, %v751
      %v1127 = vmul.f32 %v1105, %v752
      %v1128 = vmul.f32 %v1105, %v753
      %v1129 = vmul.f32 %v1105, %v754
      %v1130 = vmul.f32 %v1105, %v755
      %v1131 = vmul.f32 %v1105, %v756
      %v1132 = vmul.f32 %v1105, %v757
      %v1133 = vmul.f32 %v1105, %v758
      %v1134 = vmul.f32 %v1105, %v759
      %v1135 = vmul.f32 %v1105, %v760
      %v1136 = vmul.f32 %v1105, %v761
      %v1137 = vmul.f32 %v1105, %v762
      %v1138 = vadd.f32 %v1072, %v1106
      %v1139 = vadd.f32 %v1073, %v1107
      %v1140 = vadd.f32 %v1074, %v1108
      %v1141 = vadd.f32 %v1075, %v1109
      %v1142 = vadd.f32 %v1076, %v1110
      %v1143 = vadd.f32 %v1077, %v1111
      %v1144 = vadd.f32 %v1078, %v1112
      %v1145 = vadd.f32 %v1079, %v1113
      %v1146 = vadd.f32 %v1080, %v1114
      %v1147 = vadd.f32 %v1081, %v1115
      %v1148 = vadd.f32 %v1082, %v1116
      %v1149 = vadd.f32 %v1083, %v1117
      %v1150 = vadd.f32 %v1084, %v1118
      %v1151 = vadd.f32 %v1085, %v1119
      %v1152 = vadd.f32 %v1086, %v1120
      %v1153 = vadd.f32 %v1087, %v1121
      %v1154 = vadd.f32 %v1088, %v1122
      %v1155 = vadd.f32 %v1089, %v1123
      %v1156 = vadd.f32 %v1090, %v1124
      %v1157 = vadd.f32 %v1091, %v1125
      %v1158 = vadd.f32 %v1092, %v1126
      %v1159 = vadd.f32 %v1093, %v1127
      %v1160 = vadd.f32 %v1094, %v1128
      %v1161 = vadd.f32 %v1095, %v1129
      %v1162 = vadd.f32 %v1096, %v1130
      %v1163 = vadd.f32 %v1097, %v1131
      %v1164 = vadd.f32 %v1098, %v1132
      %v1165 = vadd.f32 %v1099, %v1133
      %v1166 = vadd.f32 %v1100, %v1134
      %v1167 = vadd.f32 %v1101, %v1135
      %v1168 = vadd.f32 %v1102, %v1136
      %v1169 = vadd.f32 %v1103, %v1137
      %1170 = vst [vmem:[#allocation2] sm:$0xff] %v1138
      %1171 = vst [vmem:[#allocation2 + $0x8] sm:$0xff] %v1139
      %1172 = vst [vmem:[#allocation2 + $0x10] sm:$0xff] %v1140
      %1173 = vst [vmem:[#allocation2 + $0x18] sm:$0xff] %v1141
      %1174 = vst [vmem:[#allocation2 + $0x20] sm:$0xff] %v1142
      %1175 = vst [vmem:[#allocation2 + $0x28] sm:$0xff] %v1143
      %1176 = vst [vmem:[#allocation2 + $0x30] sm:$0xff] %v1144
      %1177 = vst [vmem:[#allocation2 + $0x38] sm:$0xff] %v1145
      %1178 = vst [vmem:[#allocation2 + $0x40] sm:$0xff] %v1146
      %1179 = vst [vmem:[#allocation2 + $0x48] sm:$0xff] %v1147
      %1180 = vst [vmem:[#allocation2 + $0x50] sm:$0xff] %v1148
      %1181 = vst [vmem:[#allocation2 + $0x58] sm:$0xff] %v1149
      %1182 = vst [vmem:[#allocation2 + $0x60] sm:$0xff] %v1150
      %1183 = vst [vmem:[#allocation2 + $0x68] sm:$0xff] %v1151
      %1184 = vst [vmem:[#allocation2 + $0x70] sm:$0xff] %v1152
      %1185 = vst [vmem:[#allocation2 + $0x78] sm:$0xff] %v1153
      %1186 = vst [vmem:[#allocation2 + $0x80] sm:$0xff] %v1154
      %1187 = vst [vmem:[#allocation2 + $0x88] sm:$0xff] %v1155
      %1188 = vst [vmem:[#allocation2 + $0x90] sm:$0xff] %v1156
      %1189 = vst [vmem:[#allocation2 + $0x98] sm:$0xff] %v1157
      %1190 = vst [vmem:[#allocation2 + $0xa0] sm:$0xff] %v1158
      %1191 = vst [vmem:[#allocation2 + $0xa8] sm:$0xff] %v1159
      %1192 = vst [vmem:[#allocation2 + $0xb0] sm:$0xff] %v1160
      %1193 = vst [vmem:[#allocation2 + $0xb8] sm:$0xff] %v1161
      %1194 = vst [vmem:[#allocation2 + $0xc0] sm:$0xff] %v1162
      %1195 = vst [vmem:[#allocation2 + $0xc8] sm:$0xff] %v1163
      %1196 = vst [vmem:[#allocation2 + $0xd0] sm:$0xff] %v1164
      %1197 = vst [vmem:[#allocation2 + $0xd8] sm:$0xff] %v1165
      %1198 = vst [vmem:[#allocation2 + $0xe0] sm:$0xff] %v1166
      %1199 = vst [vmem:[#allocation2 + $0xe8] sm:$0xff] %v1167
      %1200 = vst [vmem:[#allocation2 + $0xf0] sm:$0xff] %v1168
      %1201 = vst [vmem:[#allocation2 + $0xf8] sm:$0xff] %v1169
    $region45: #{tpu_custom_call.1} parent=1 // pred_fallthru
      _
    // Predicated region
    $region46: #{tpu_custom_call.1} parent=1 // pred_check
      %p1202 = pneg %p77
    $region47: #{tpu_custom_call.1} parent=1 // pred_check_branch
      %1204 = sbr.rel (%p1202) target = $region49
    $region48: #{tpu_custom_call.1} parent=1 // pred_region
      %v1205 = vld [vmem:[#allocation2] sm:$0xff]
      %v1206 = vld [vmem:[#allocation2 + $0x8] sm:$0xff]
      %v1207 = vld [vmem:[#allocation2 + $0x10] sm:$0xff]
      %v1208 = vld [vmem:[#allocation2 + $0x18] sm:$0xff]
      %v1209 = vld [vmem:[#allocation2 + $0x20] sm:$0xff]
      %v1210 = vld [vmem:[#allocation2 + $0x28] sm:$0xff]
      %v1211 = vld [vmem:[#allocation2 + $0x30] sm:$0xff]
      %v1212 = vld [vmem:[#allocation2 + $0x38] sm:$0xff]
      %v1213 = vld [vmem:[#allocation2 + $0x40] sm:$0xff]
      %v1214 = vld [vmem:[#allocation2 + $0x48] sm:$0xff]
      %v1215 = vld [vmem:[#allocation2 + $0x50] sm:$0xff]
      %v1216 = vld [vmem:[#allocation2 + $0x58] sm:$0xff]
      %v1217 = vld [vmem:[#allocation2 + $0x60] sm:$0xff]
      %v1218 = vld [vmem:[#allocation2 + $0x68] sm:$0xff]
      %v1219 = vld [vmem:[#allocation2 + $0x70] sm:$0xff]
      %v1220 = vld [vmem:[#allocation2 + $0x78] sm:$0xff]
      %v1221 = vld [vmem:[#allocation2 + $0x80] sm:$0xff]
      %v1222 = vld [vmem:[#allocation2 + $0x88] sm:$0xff]
      %v1223 = vld [vmem:[#allocation2 + $0x90] sm:$0xff]
      %v1224 = vld [vmem:[#allocation2 + $0x98] sm:$0xff]
      %v1225 = vld [vmem:[#allocation2 + $0xa0] sm:$0xff]
      %v1226 = vld [vmem:[#allocation2 + $0xa8] sm:$0xff]
      %v1227 = vld [vmem:[#allocation2 + $0xb0] sm:$0xff]
      %v1228 = vld [vmem:[#allocation2 + $0xb8] sm:$0xff]
      %v1229 = vld [vmem:[#allocation2 + $0xc0] sm:$0xff]
      %v1230 = vld [vmem:[#allocation2 + $0xc8] sm:$0xff]
      %v1231 = vld [vmem:[#allocation2 + $0xd0] sm:$0xff]
      %v1232 = vld [vmem:[#allocation2 + $0xd8] sm:$0xff]
      %v1233 = vld [vmem:[#allocation2 + $0xe0] sm:$0xff]
      %v1234 = vld [vmem:[#allocation2 + $0xe8] sm:$0xff]
      %v1235 = vld [vmem:[#allocation2 + $0xf0] sm:$0xff]
      %v1236 = vld [vmem:[#allocation2 + $0xf8] sm:$0xff]
      %1237 = vst [vmem:[#allocation12] sm:$0xff] %v1205
      %1238 = vst [vmem:[#allocation12 + $0x8] sm:$0xff] %v1206
      %1239 = vst [vmem:[#allocation12 + $0x10] sm:$0xff] %v1207
      %1240 = vst [vmem:[#allocation12 + $0x18] sm:$0xff] %v1208
      %1241 = vst [vmem:[#allocation12 + $0x20] sm:$0xff] %v1209
      %1242 = vst [vmem:[#allocation12 + $0x28] sm:$0xff] %v1210
      %1243 = vst [vmem:[#allocation12 + $0x30] sm:$0xff] %v1211
      %1244 = vst [vmem:[#allocation12 + $0x38] sm:$0xff] %v1212
      %1245 = vst [vmem:[#allocation12 + $0x40] sm:$0xff] %v1213
      %1246 = vst [vmem:[#allocation12 + $0x48] sm:$0xff] %v1214
      %1247 = vst [vmem:[#allocation12 + $0x50] sm:$0xff] %v1215
      %1248 = vst [vmem:[#allocation12 + $0x58] sm:$0xff] %v1216
      %1249 = vst [vmem:[#allocation12 + $0x60] sm:$0xff] %v1217
      %1250 = vst [vmem:[#allocation12 + $0x68] sm:$0xff] %v1218
      %1251 = vst [vmem:[#allocation12 + $0x70] sm:$0xff] %v1219
      %1252 = vst [vmem:[#allocation12 + $0x78] sm:$0xff] %v1220
      %1253 = vst [vmem:[#allocation12 + $0x80] sm:$0xff] %v1221
      %1254 = vst [vmem:[#allocation12 + $0x88] sm:$0xff] %v1222
      %1255 = vst [vmem:[#allocation12 + $0x90] sm:$0xff] %v1223
      %1256 = vst [vmem:[#allocation12 + $0x98] sm:$0xff] %v1224
      %1257 = vst [vmem:[#allocation12 + $0xa0] sm:$0xff] %v1225
      %1258 = vst [vmem:[#allocation12 + $0xa8] sm:$0xff] %v1226
      %1259 = vst [vmem:[#allocation12 + $0xb0] sm:$0xff] %v1227
      %1260 = vst [vmem:[#allocation12 + $0xb8] sm:$0xff] %v1228
      %1261 = vst [vmem:[#allocation12 + $0xc0] sm:$0xff] %v1229
      %1262 = vst [vmem:[#allocation12 + $0xc8] sm:$0xff] %v1230
      %1263 = vst [vmem:[#allocation12 + $0xd0] sm:$0xff] %v1231
      %1264 = vst [vmem:[#allocation12 + $0xd8] sm:$0xff] %v1232
      %1265 = vst [vmem:[#allocation12 + $0xe0] sm:$0xff] %v1233
      %1266 = vst [vmem:[#allocation12 + $0xe8] sm:$0xff] %v1234
      %1267 = vst [vmem:[#allocation12 + $0xf0] sm:$0xff] %v1235
      %1268 = vst [vmem:[#allocation12 + $0xf8] sm:$0xff] %v1236
      %v1269 = vld [vmem:[#allocation10] sm:$0xff]
      %v1270 = vld [vmem:[#allocation10 + $0x8] sm:$0xff]
      %v1271 = vld [vmem:[#allocation10 + $0x10] sm:$0xff]
      %v1272 = vld [vmem:[#allocation10 + $0x18] sm:$0xff]
      %v1273 = vld [vmem:[#allocation10 + $0x20] sm:$0xff]
      %v1274 = vld [vmem:[#allocation10 + $0x28] sm:$0xff]
      %v1275 = vld [vmem:[#allocation10 + $0x30] sm:$0xff]
      %v1276 = vld [vmem:[#allocation10 + $0x38] sm:$0xff]
      %v1277 = vld [vmem:[#allocation10 + $0x40] sm:$0xff]
      %v1278 = vld [vmem:[#allocation10 + $0x48] sm:$0xff]
      %v1279 = vld [vmem:[#allocation10 + $0x50] sm:$0xff]
      %v1280 = vld [vmem:[#allocation10 + $0x58] sm:$0xff]
      %v1281 = vld [vmem:[#allocation10 + $0x60] sm:$0xff]
      %v1282 = vld [vmem:[#allocation10 + $0x68] sm:$0xff]
      %v1283 = vld [vmem:[#allocation10 + $0x70] sm:$0xff]
      %v1284 = vld [vmem:[#allocation10 + $0x78] sm:$0xff]
      %v1285 = vld [vmem:[%s4] sm:$0x1]
      %v1287 = vlaneseq
      %v1288 = vshrl.u32 %v1287, 7
      %v1289 = vsub.s32 0, %v1288
      %v1290 = vrot.slane %v1285, %v1289
      %1292 = vmatprep.subr.mxu0 0.0
      %1293 = vmatpush1.msra.mxu0 %v1284
      %1294 = vmatprep.subr.mxu0 0.0
      %1295 = vmatpush1.msra.mxu0 %v1283
      %1296 = vmatprep.subr.mxu0 0.0
      %1297 = vmatpush1.msra.mxu0 %v1282
      %1298 = vmatprep.subr.mxu0 0.0
      %1299 = vmatpush1.msra.mxu0 %v1281
      %1300 = vmatprep.subr.mxu0 0.0
      %1301 = vmatpush1.msra.mxu0 %v1280
      %1302 = vmatprep.subr.mxu0 0.0
      %1303 = vmatpush1.msra.mxu0 %v1279
      %1304 = vmatprep.subr.mxu0 0.0
      %1305 = vmatpush1.msra.mxu0 %v1278
      %1306 = vmatprep.subr.mxu0 0.0
      %1307 = vmatpush1.msra.mxu0 %v1277
      %1308 = vmatprep.subr.mxu0 0.0
      %1309 = vmatpush1.msra.mxu0 %v1276
      %1310 = vmatprep.subr.mxu0 0.0
      %1311 = vmatpush1.msra.mxu0 %v1275
      %1312 = vmatprep.subr.mxu0 0.0
      %1313 = vmatpush1.msra.mxu0 %v1274
      %1314 = vmatprep.subr.mxu0 0.0
      %1315 = vmatpush1.msra.mxu0 %v1273
      %1316 = vmatprep.subr.mxu0 0.0
      %1317 = vmatpush1.msra.mxu0 %v1272
      %1318 = vmatprep.subr.mxu0 0.0
      %1319 = vmatpush1.msra.mxu0 %v1271
      %1320 = vmatprep.subr.mxu0 0.0
      %1321 = vmatpush1.msra.mxu0 %v1270
      %1322 = vmatprep.subr.mxu0 0.0
      %1323 = vmatpush1.msra.mxu0 %v1269
      %1324 = vmatprep.subr.mxu0 0.0
      %1325 = vmatpush2.msra.mxu0 0.0
      %1326 = vmatprep.subr.mxu0 0.0
      %1327 = vmatpush2.msra.mxu0 0.0
      %1328 = vmatprep.subr.mxu0 0.0
      %1329 = vmatpush2.msra.mxu0 0.0
      %1330 = vmatprep.subr.mxu0 0.0
      %1331 = vmatpush2.msra.mxu0 0.0
      %1332 = vmatprep.subr.mxu0 0.0
      %1333 = vmatpush2.msra.mxu0 0.0
      %1334 = vmatprep.subr.mxu0 0.0
      %1335 = vmatpush2.msra.mxu0 0.0
      %1336 = vmatprep.subr.mxu0 0.0
      %1337 = vmatpush2.msra.mxu0 0.0
      %1338 = vmatprep.subr.mxu0 0.0
      %1339 = vmatpush2.msra.mxu0 0.0
      %1340 = vmatprep.subr.mxu0 0.0
      %1341 = vmatpush2.msra.mxu0 0.0
      %1342 = vmatprep.subr.mxu0 0.0
      %1343 = vmatpush2.msra.mxu0 0.0
      %1344 = vmatprep.subr.mxu0 0.0
      %1345 = vmatpush2.msra.mxu0 0.0
      %1346 = vmatprep.subr.mxu0 0.0
      %1347 = vmatpush2.msra.mxu0 0.0
      %1348 = vmatprep.subr.mxu0 0.0
      %1349 = vmatpush2.msra.mxu0 0.0
      %1350 = vmatprep.subr.mxu0 0.0
      %1351 = vmatpush2.msra.mxu0 0.0
      %1352 = vmatprep.subr.mxu0 0.0
      %1353 = vmatpush2.msra.mxu0 0.0
      %1354 = vmatprep.subr.mxu0 0.0
      %1355 = vmatpush2.msra.mxu0 0.0
      %1356 = vmatprep.mubr.f32.mxu0 0.0
      %1357 = vmatmul.mubr.f32.gmra.mxu0 %v1205
      %v1358 = vpop.f32.mrf.mxu0
      %v1359 = vadd.f32 %v1290, %v1358
      %v1360 = vpop.f32.mrf.mxu0
      %1361 = vmatprep.mubr.f32.mxu0 0.0
      %1362 = vmatmul.mubr.f32.gmra.mxu0 %v1206
      %v1363 = vpop.f32.mrf.mxu0
      %v1364 = vadd.f32 %v1290, %v1363
      %v1365 = vpop.f32.mrf.mxu0
      %1366 = vmatprep.mubr.f32.mxu0 0.0
      %1367 = vmatmul.mubr.f32.gmra.mxu0 %v1207
      %v1368 = vpop.f32.mrf.mxu0
      %v1369 = vadd.f32 %v1290, %v1368
      %v1370 = vpop.f32.mrf.mxu0
      %1371 = vmatprep.mubr.f32.mxu0 0.0
      %1372 = vmatmul.mubr.f32.gmra.mxu0 %v1208
      %v1373 = vpop.f32.mrf.mxu0
      %v1374 = vadd.f32 %v1290, %v1373
      %v1375 = vpop.f32.mrf.mxu0
      %1376 = vmatprep.mubr.f32.mxu0 0.0
      %1377 = vmatmul.mubr.f32.gmra.mxu0 %v1209
      %v1378 = vpop.f32.mrf.mxu0
      %v1379 = vadd.f32 %v1290, %v1378
      %v1380 = vpop.f32.mrf.mxu0
      %1381 = vmatprep.mubr.f32.mxu0 0.0
      %1382 = vmatmul.mubr.f32.gmra.mxu0 %v1210
      %v1383 = vpop.f32.mrf.mxu0
      %v1384 = vadd.f32 %v1290, %v1383
      %v1385 = vpop.f32.mrf.mxu0
      %1386 = vmatprep.mubr.f32.mxu0 0.0
      %1387 = vmatmul.mubr.f32.gmra.mxu0 %v1211
      %v1388 = vpop.f32.mrf.mxu0
      %v1389 = vadd.f32 %v1290, %v1388
      %v1390 = vpop.f32.mrf.mxu0
      %1391 = vmatprep.mubr.f32.mxu0 0.0
      %1392 = vmatmul.mubr.f32.gmra.mxu0 %v1212
      %v1393 = vpop.f32.mrf.mxu0
      %v1394 = vadd.f32 %v1290, %v1393
      %v1395 = vpop.f32.mrf.mxu0
      %1396 = vmatprep.mubr.f32.mxu0 0.0
      %1397 = vmatmul.mubr.f32.gmra.mxu0 %v1213
      %v1398 = vpop.f32.mrf.mxu0
      %v1399 = vadd.f32 %v1290, %v1398
      %v1400 = vpop.f32.mrf.mxu0
      %1401 = vmatprep.mubr.f32.mxu0 0.0
      %1402 = vmatmul.mubr.f32.gmra.mxu0 %v1214
      %v1403 = vpop.f32.mrf.mxu0
      %v1404 = vadd.f32 %v1290, %v1403
      %v1405 = vpop.f32.mrf.mxu0
      %1406 = vmatprep.mubr.f32.mxu0 0.0
      %1407 = vmatmul.mubr.f32.gmra.mxu0 %v1215
      %v1408 = vpop.f32.mrf.mxu0
      %v1409 = vadd.f32 %v1290, %v1408
      %v1410 = vpop.f32.mrf.mxu0
      %1411 = vmatprep.mubr.f32.mxu0 0.0
      %1412 = vmatmul.mubr.f32.gmra.mxu0 %v1216
      %v1413 = vpop.f32.mrf.mxu0
      %v1414 = vadd.f32 %v1290, %v1413
      %v1415 = vpop.f32.mrf.mxu0
      %1416 = vmatprep.mubr.f32.mxu0 0.0
      %1417 = vmatmul.mubr.f32.gmra.mxu0 %v1217
      %v1418 = vpop.f32.mrf.mxu0
      %v1419 = vadd.f32 %v1290, %v1418
      %v1420 = vpop.f32.mrf.mxu0
      %1421 = vmatprep.mubr.f32.mxu0 0.0
      %1422 = vmatmul.mubr.f32.gmra.mxu0 %v1218
      %v1423 = vpop.f32.mrf.mxu0
      %v1424 = vadd.f32 %v1290, %v1423
      %v1425 = vpop.f32.mrf.mxu0
      %1426 = vmatprep.mubr.f32.mxu0 0.0
      %1427 = vmatmul.mubr.f32.gmra.mxu0 %v1219
      %v1428 = vpop.f32.mrf.mxu0
      %v1429 = vadd.f32 %v1290, %v1428
      %v1430 = vpop.f32.mrf.mxu0
      %1431 = vmatprep.mubr.f32.mxu0 0.0
      %1432 = vmatmul.mubr.f32.gmra.mxu0 %v1220
      %v1433 = vpop.f32.mrf.mxu0
      %v1434 = vadd.f32 %v1290, %v1433
      %v1435 = vpop.f32.mrf.mxu0
      %1436 = vmatprep.mubr.f32.mxu0 0.0
      %1437 = vmatmul.mubr.f32.gmra.mxu0 %v1221
      %v1438 = vpop.f32.mrf.mxu0
      %v1439 = vadd.f32 %v1290, %v1438
      %v1440 = vpop.f32.mrf.mxu0
      %1441 = vmatprep.mubr.f32.mxu0 0.0
      %1442 = vmatmul.mubr.f32.gmra.mxu0 %v1222
      %v1443 = vpop.f32.mrf.mxu0
      %v1444 = vadd.f32 %v1290, %v1443
      %v1445 = vpop.f32.mrf.mxu0
      %1446 = vmatprep.mubr.f32.mxu0 0.0
      %1447 = vmatmul.mubr.f32.gmra.mxu0 %v1223
      %v1448 = vpop.f32.mrf.mxu0
      %v1449 = vadd.f32 %v1290, %v1448
      %v1450 = vpop.f32.mrf.mxu0
      %1451 = vmatprep.mubr.f32.mxu0 0.0
      %1452 = vmatmul.mubr.f32.gmra.mxu0 %v1224
      %v1453 = vpop.f32.mrf.mxu0
      %v1454 = vadd.f32 %v1290, %v1453
      %v1455 = vpop.f32.mrf.mxu0
      %1456 = vmatprep.mubr.f32.mxu0 0.0
      %1457 = vmatmul.mubr.f32.gmra.mxu0 %v1225
      %v1458 = vpop.f32.mrf.mxu0
      %v1459 = vadd.f32 %v1290, %v1458
      %v1460 = vpop.f32.mrf.mxu0
      %1461 = vmatprep.mubr.f32.mxu0 0.0
      %1462 = vmatmul.mubr.f32.gmra.mxu0 %v1226
      %v1463 = vpop.f32.mrf.mxu0
      %v1464 = vadd.f32 %v1290, %v1463
      %v1465 = vpop.f32.mrf.mxu0
      %1466 = vmatprep.mubr.f32.mxu0 0.0
      %1467 = vmatmul.mubr.f32.gmra.mxu0 %v1227
      %v1468 = vpop.f32.mrf.mxu0
      %v1469 = vadd.f32 %v1290, %v1468
      %v1470 = vpop.f32.mrf.mxu0
      %1471 = vmatprep.mubr.f32.mxu0 0.0
      %1472 = vmatmul.mubr.f32.gmra.mxu0 %v1228
      %v1473 = vpop.f32.mrf.mxu0
      %v1474 = vadd.f32 %v1290, %v1473
      %v1475 = vpop.f32.mrf.mxu0
      %1476 = vmatprep.mubr.f32.mxu0 0.0
      %1477 = vmatmul.mubr.f32.gmra.mxu0 %v1229
      %v1478 = vpop.f32.mrf.mxu0
      %v1479 = vadd.f32 %v1290, %v1478
      %v1480 = vpop.f32.mrf.mxu0
      %1481 = vmatprep.mubr.f32.mxu0 0.0
      %1482 = vmatmul.mubr.f32.gmra.mxu0 %v1230
      %v1483 = vpop.f32.mrf.mxu0
      %v1484 = vadd.f32 %v1290, %v1483
      %v1485 = vpop.f32.mrf.mxu0
      %1486 = vmatprep.mubr.f32.mxu0 0.0
      %1487 = vmatmul.mubr.f32.gmra.mxu0 %v1231
      %v1488 = vpop.f32.mrf.mxu0
      %v1489 = vadd.f32 %v1290, %v1488
      %v1490 = vpop.f32.mrf.mxu0
      %1491 = vmatprep.mubr.f32.mxu0 0.0
      %1492 = vmatmul.mubr.f32.gmra.mxu0 %v1232
      %v1493 = vpop.f32.mrf.mxu0
      %v1494 = vadd.f32 %v1290, %v1493
      %v1495 = vpop.f32.mrf.mxu0
      %1496 = vmatprep.mubr.f32.mxu0 0.0
      %1497 = vmatmul.mubr.f32.gmra.mxu0 %v1233
      %v1498 = vpop.f32.mrf.mxu0
      %v1499 = vadd.f32 %v1290, %v1498
      %v1500 = vpop.f32.mrf.mxu0
      %1501 = vmatprep.mubr.f32.mxu0 0.0
      %1502 = vmatmul.mubr.f32.gmra.mxu0 %v1234
      %v1503 = vpop.f32.mrf.mxu0
      %v1504 = vadd.f32 %v1290, %v1503
      %v1505 = vpop.f32.mrf.mxu0
      %1506 = vmatprep.mubr.f32.mxu0 0.0
      %1507 = vmatmul.mubr.f32.gmra.mxu0 %v1235
      %v1508 = vpop.f32.mrf.mxu0
      %v1509 = vadd.f32 %v1290, %v1508
      %v1510 = vpop.f32.mrf.mxu0
      %1511 = vmatprep.mubr.f32.mxu0 0.0
      %1512 = vmatmul.mubr.f32.gmra.mxu0 %v1236
      %v1513 = vpop.f32.mrf.mxu0
      %v1514 = vadd.f32 %v1290, %v1513
      %v1515 = vpop.f32.mrf.mxu0
      %1516 = vdwg.mxu0
      %1517 = vst [vmem:[#allocation11] sm:$0xff] %v1359
      %1518 = vst [vmem:[#allocation11 + $0x8] sm:$0xff] %v1364
      %1519 = vst [vmem:[#allocation11 + $0x10] sm:$0xff] %v1369
      %1520 = vst [vmem:[#allocation11 + $0x18] sm:$0xff] %v1374
      %1521 = vst [vmem:[#allocation11 + $0x20] sm:$0xff] %v1379
      %1522 = vst [vmem:[#allocation11 + $0x28] sm:$0xff] %v1384
      %1523 = vst [vmem:[#allocation11 + $0x30] sm:$0xff] %v1389
      %1524 = vst [vmem:[#allocation11 + $0x38] sm:$0xff] %v1394
      %1525 = vst [vmem:[#allocation11 + $0x40] sm:$0xff] %v1399
      %1526 = vst [vmem:[#allocation11 + $0x48] sm:$0xff] %v1404
      %1527 = vst [vmem:[#allocation11 + $0x50] sm:$0xff] %v1409
      %1528 = vst [vmem:[#allocation11 + $0x58] sm:$0xff] %v1414
      %1529 = vst [vmem:[#allocation11 + $0x60] sm:$0xff] %v1419
      %1530 = vst [vmem:[#allocation11 + $0x68] sm:$0xff] %v1424
      %1531 = vst [vmem:[#allocation11 + $0x70] sm:$0xff] %v1429
      %1532 = vst [vmem:[#allocation11 + $0x78] sm:$0xff] %v1434
      %1533 = vst [vmem:[#allocation11 + $0x80] sm:$0xff] %v1439
      %1534 = vst [vmem:[#allocation11 + $0x88] sm:$0xff] %v1444
      %1535 = vst [vmem:[#allocation11 + $0x90] sm:$0xff] %v1449
      %1536 = vst [vmem:[#allocation11 + $0x98] sm:$0xff] %v1454
      %1537 = vst [vmem:[#allocation11 + $0xa0] sm:$0xff] %v1459
      %1538 = vst [vmem:[#allocation11 + $0xa8] sm:$0xff] %v1464
      %1539 = vst [vmem:[#allocation11 + $0xb0] sm:$0xff] %v1469
      %1540 = vst [vmem:[#allocation11 + $0xb8] sm:$0xff] %v1474
      %1541 = vst [vmem:[#allocation11 + $0xc0] sm:$0xff] %v1479
      %1542 = vst [vmem:[#allocation11 + $0xc8] sm:$0xff] %v1484
      %1543 = vst [vmem:[#allocation11 + $0xd0] sm:$0xff] %v1489
      %1544 = vst [vmem:[#allocation11 + $0xd8] sm:$0xff] %v1494
      %1545 = vst [vmem:[#allocation11 + $0xe0] sm:$0xff] %v1499
      %1546 = vst [vmem:[#allocation11 + $0xe8] sm:$0xff] %v1504
      %1547 = vst [vmem:[#allocation11 + $0xf0] sm:$0xff] %v1509
      %1548 = vst [vmem:[#allocation11 + $0xf8] sm:$0xff] %v1514
    $region49: #{tpu_custom_call.1} parent=1 // pred_fallthru
      _
    // Predicated region
    $region50: #{tpu_custom_call.1} parent=1 // pred_check
      _
    $region51: #{tpu_custom_call.1} parent=1 // pred_check_branch
      %1550 = sbr.rel (0) target = $region53
    $region52: #{tpu_custom_call.1} parent=1 // pred_region
      %s1552 = ssub.s32 4096, 4096
      %1553 = vsyncadd [#allocation5], %s1552
      %s1554 = sshll.u32 [#allocation11], 4
      %s1555 = int_to_ptr.vmem [resolvable:$true] %s1554
      %1560 = dma.vmem_to_hbm [thread:$0]  %s1555, 4096, %s5, [#allocation5], 128, 128, 8
    $region53: #{tpu_custom_call.1} parent=1 // pred_fallthru
      _
    // Predicated region
    $region54: #{tpu_custom_call.1} parent=1 // pred_check
      _
    $region55: #{tpu_custom_call.1} parent=1 // pred_check_branch
      %1562 = sbr.rel (0) target = $region57
    $region56: #{tpu_custom_call.1} parent=1 // pred_region
      %s1564 = ssub.s32 4096, 4096
      %1565 = vsyncadd [#allocation13], %s1564
      %s1566 = sshll.u32 [#allocation12], 4
      %s1567 = int_to_ptr.vmem [resolvable:$true] %s1566
      %1572 = dma.vmem_to_hbm [thread:$0]  %s1567, 4096, %s6, [#allocation13], 128, 128, 8
    $region57: #{tpu_custom_call.1} parent=1 // pred_fallthru
      _
    // Predicated region
    $region58: #{tpu_custom_call.1} parent=1 // pred_check
      _
    $region59: #{tpu_custom_call.1} parent=1 // pred_check_branch
      %1574 = sbr.rel (0) target = $region61
    $region60: #{tpu_custom_call.1} parent=1 // pred_region
      %1575 = dma.done [#allocation5], 4096
    $region61: #{tpu_custom_call.1} parent=1 // pred_fallthru
      _
    // Predicated region
    $region62: #{tpu_custom_call.1} parent=1 // pred_check
      _
    $region63: #{tpu_custom_call.1} parent=1 // pred_check_branch
      %1577 = sbr.rel (0) target = $region65
    $region64: #{tpu_custom_call.1} parent=1 // pred_region
      %1578 = dma.done [#allocation13], 4096
    $region65: #{tpu_custom_call.1} parent=1 // pred_fallthru
      _
    %1579 = vsyncpa [#allocation4], 1
    %1580 = vsyncpa [#allocation9], 1
    %1581 = vsyncpa [#allocation5], 1
    %1582 = vsyncpa [#allocation13], 1
    %1583 = vsyncpa [#allocation6], 1

</llo_original>
